<compile_context>
chip_gen: v5e
topology: v5e:2x2
jax: 0.10.0
libtpu: 0.0.40
codegen_flags: <defaults>
</compile_context>

<pallas_src>
import functools

import jax
import jax.numpy as jnp
from jax import lax
from jax.experimental import pallas as pl
from jax.experimental.pallas import tpu as pltpu

EPS = 1e-5


# ----------------------------------------------------------------------------
# VMEM budgeting / tile selection
# ----------------------------------------------------------------------------
def _vmem_cap_bytes():
    try:
        info = pltpu.get_tpu_info()
        for name in ("vmem_capacity_bytes", "vmem_size_bytes", "vmem_bytes"):
            v = getattr(info, name, None)
            if v:
                return int(v)
    except Exception:
        pass
    return 64 << 20  # conservative fallback (v7x physical VMEM)


def _usable_vmem():
    # Keep ~8 MiB headroom below the physical cap (Mosaic internal scratch,
    # semaphores, layout padding) -- capacity-relative, not hard-coded.
    return max(_vmem_cap_bytes() - (8 << 20), 16 << 20)


def _sublane_multiple(dtype):
    # f32 -> 8 rows, bf16 -> 16, int8/fp8 -> 32 (sub-32-bit packs sublanes).
    return max(8, 32 // jnp.dtype(dtype).itemsize)


def _round_up(x, mult):
    return ((x + mult - 1) // mult) * mult


def _compiler_params(need_bytes, semantics):
    limit = int(min(max(need_bytes + (4 << 20), 32 << 20), _usable_vmem()))
    return pltpu.CompilerParams(dimension_semantics=semantics,
                                vmem_limit_bytes=limit)


def _pick_tile_m(m, row_bytes, budget, mult):
    """Largest M tile (multiple of `mult`; grid uses cdiv so M need not divide)
    whose per-tile footprint fits `budget`; prefers >=4 grid steps (>=2 per v7x
    TensorCore) as long as the tile stays >= 512 rows."""
    m_r = _round_up(m, mult)
    cands = [t for t in (8192, 4096, 2048, 1024, 512, 256, 128, 64, 32, 16, 8)
             if t % mult == 0 and t <= m_r]
    if not cands:
        return m_r
    fitting = [t for t in cands if t * row_bytes <= budget] or [cands[-1]]
    best = fitting[0]
    for t in fitting:                       # descending
        if t < 512 and t != fitting[0]:
            break                           # don't shrink below 512 rows
        best = t
        if pl.cdiv(m, t) >= 4:
            break
    return best


def _pick_row_tile(h_out, w_out, n_images, row_bytes, budget, mult):
    """Output-row tile for the fused 3x3 kernel: a divisor of h_out whose
    (th*w_out, C) blocks obey the sublane rule and fit the VMEM budget,
    preferring >=4 total grid steps (megacore) above a ~512-row floor."""
    divs = [t for t in range(h_out, 0, -1) if h_out % t == 0]
    feas = [t for t in divs
            if (t == h_out or (t * w_out) % mult == 0)
            and t * w_out * row_bytes <= budget]
    if not feas:
        return h_out                        # full-extent block is always legal
    floor_rows = min(512, feas[0] * w_out)
    best = feas[0]
    for t in feas:                          # descending
        if t * w_out < floor_rows and t != feas[0]:
            break
        best = t
        if n_images * (h_out // t) >= 4:
            break
    return best


# ----------------------------------------------------------------------------
# Pallas kernels
# ----------------------------------------------------------------------------
def _pw_bn_relu_kernel(x_ref, w_ref, shift_ref, o_ref):
    # conv1: 1x1 conv as one MXU matmul; BN scale pre-folded into w.
    y = jnp.dot(x_ref[...], w_ref[...], preferred_element_type=jnp.float32)
    o_ref[...] = jnp.maximum(y + shift_ref[...], 0.0).astype(o_ref.dtype)


def _conv3x3_accum(x_ref, w2_ref, *, th, w_out, stride, dilation):
    """9-tap 3x3 conv over the phase-split, padded conv1 output held in VMEM.

    x_ref: (s, s, Hq, Wq, Cb) -- the whole padded image in row/column phase
    layout, so tap (ky, kx) lives in phase ((ky*d)%s, (kx*d)%s) and is a
    *contiguous* (th, w_out) window at quotient offset ((ky*d)//s, (kx*d)//s).
    Accumulates 9 MXU matmuls in f32 (in-register reduction, no HBM im2col).
    """
    row0 = pl.program_id(1) * th
    acc = None
    for ky in range(3):
        a, qy = (ky * dilation) % stride, (ky * dilation) // stride
        for kx in range(3):
            b, qx = (kx * dilation) % stride, (kx * dilation) // stride
            win = x_ref[a, b, pl.ds(qy + row0, th), pl.ds(qx, w_out), :]
            part = jnp.dot(win.reshape(th * w_out, win.shape[-1]),
                           w2_ref[3 * ky + kx],
                           preferred_element_type=jnp.float32)
            acc = part if acc is None else acc + part
    return acc


def _tail_ds_kernel(x_ref, w2_ref, b2_ref, w3_ref, xd_ref, wd_ref, b3_ref,
                    o_ref, *, th, w_out, stride, dilation):
    # conv2+bn2+relu -> conv3+bn3 + (downsample 1x1 conv + bn of x) + residual.
    y2 = _conv3x3_accum(x_ref, w2_ref, th=th, w_out=w_out,
                        stride=stride, dilation=dilation)
    y2 = jnp.maximum(y2 + b2_ref[...], 0.0).astype(w3_ref.dtype)
    y3 = jnp.dot(y2, w3_ref[...], preferred_element_type=jnp.float32)
    y3 = y3 + jnp.dot(xd_ref[...], wd_ref[...],
                      preferred_element_type=jnp.float32)
    # NOTE: no ReLU after the residual add -- matches the PyTorch module.
    o_ref[...] = (y3 + b3_ref[...]).astype(o_ref.dtype)


def _tail_id_kernel(x_ref, w2_ref, b2_ref, w3_ref, res_ref, b3_ref,
                    o_ref, *, th, w_out, stride, dilation):
    # conv2+bn2+relu -> conv3+bn3 + identity residual (no downsample branch).
    y2 = _conv3x3_accum(x_ref, w2_ref, th=th, w_out=w_out,
                        stride=stride, dilation=dilation)
    y2 = jnp.maximum(y2 + b2_ref[...], 0.0).astype(w3_ref.dtype)
    y3 = jnp.dot(y2, w3_ref[...], preferred_element_type=jnp.float32)
    o_ref[...] = (y3 + b3_ref[...] + res_ref[...].astype(jnp.float32)
                  ).astype(o_ref.dtype)


# ----------------------------------------------------------------------------
# Pallas wrappers
# ----------------------------------------------------------------------------
def pw_conv_bn_relu(x2d, w_folded, shift):
    """x2d:(M,K) @ w_folded:(K,Cout) + shift, ReLU.  cdiv grid over M."""
    m, k = x2d.shape
    cout = w_folded.shape[1]
    esz = jnp.dtype(x2d.dtype).itemsize
    mult = _sublane_multiple(x2d.dtype)
    weight_bytes = k * cout * esz + cout * 4
    # per-row bytes: double-buffered in/out blocks + f32 epilogue temporaries.
    row_bytes = 2 * (k + cout) * esz + 4 * cout
    budget = max(_usable_vmem() - 2 * weight_bytes - (8 << 20), 1 << 20)
    tm = _pick_tile_m(m, row_bytes, budget, mult)
    need = 2 * weight_bytes + tm * row_bytes
    return pl.pallas_call(
        _pw_bn_relu_kernel,
        out_shape=jax.ShapeDtypeStruct((m, cout), x2d.dtype),
        grid=(pl.cdiv(m, tm),),
        in_specs=[
            pl.BlockSpec((tm, k), lambda i: (i, 0)),
            pl.BlockSpec((k, cout), lambda i: (0, 0)),
            pl.BlockSpec((1, cout), lambda i: (0, 0)),
        ],
        out_specs=pl.BlockSpec((tm, cout), lambda i: (i, 0)),
        compiler_params=_compiler_params(need, ("parallel",)),
    )(x2d, w_folded, shift.reshape(1, cout).astype(jnp.float32))


def bottleneck_tail(y1ps, w2f, b2, w3f, b3, resid, wd, *,
                    h_out, w_out, stride, dilation):
    """Fused conv2(3x3,s,d)+bn2+relu + conv3(1x1)+bn3 + residual add.

    y1ps : (N, s, s, Hq, Wq, Cb) phase-split padded conv1 output.
    resid: (N, H_out*W_out, Cin) strided identity when `wd` is given
           (downsample path), else (N, H_out*W_out, Cout) identity.
    Returns (N, H_out*W_out, Cout).
    """
    n, s0, s1, hq, wq, cb = y1ps.shape
    cout = w3f.shape[1]
    c_res = resid.shape[-1]
    esz = jnp.dtype(y1ps.dtype).itemsize
    mult = _sublane_multiple(y1ps.dtype)

    # Grid-constant blocks (image slab + weights), double-buffered by Pallas.
    fixed = (s0 * s1 * hq * wq * cb + 9 * cb * cb + cb * cout) * esz \
        + (cb + cout) * 4
    if wd is not None:
        fixed += c_res * cout * esz
    budget = max(_usable_vmem() - 2 * fixed - (8 << 20), 1 << 20)
    # per-output-row bytes: double-buffered residual/output blocks + f32 temps.
    row_bytes = 2 * (c_res + cout) * esz + 6 * cb * 4
    th = _pick_row_tile(h_out, w_out, n, row_bytes, budget, mult)
    rows = th * w_out
    need = 2 * fixed + rows * row_bytes

    x_spec = pl.BlockSpec((None, s0, s1, hq, wq, cb),
                          lambda i, j: (i, 0, 0, 0, 0, 0))
    w2_spec = pl.BlockSpec((9, cb, cb), lambda i, j: (0, 0, 0))
    b2_spec = pl.BlockSpec((1, cb), lambda i, j: (0, 0))
    w3_spec = pl.BlockSpec((cb, cout), lambda i, j: (0, 0))
    res_spec = pl.BlockSpec((None, rows, c_res), lambda i, j: (i, j, 0))
    b3_spec = pl.BlockSpec((1, cout), lambda i, j: (0, 0))
    out_spec = pl.BlockSpec((None, rows, cout), lambda i, j: (i, j, 0))

    b2_ = b2.reshape(1, cb).astype(jnp.float32)
    b3_ = b3.reshape(1, cout).astype(jnp.float32)

    if wd is not None:
        kernel = functools.partial(_tail_ds_kernel, th=th, w_out=w_out,
                                   stride=stride, dilation=dilation)
        in_specs = [x_spec, w2_spec, b2_spec, w3_spec, res_spec,
                    pl.BlockSpec((c_res, cout), lambda i, j: (0, 0)), b3_spec]
        args = (y1ps, w2f, b2_, w3f, resid, wd, b3_)
    else:
        kernel = functools.partial(_tail_id_kernel, th=th, w_out=w_out,
                                   stride=stride, dilation=dilation)
        in_specs = [x_spec, w2_spec, b2_spec, w3_spec, res_spec, b3_spec]
        args = (y1ps, w2f, b2_, w3f, resid, b3_)

    return pl.pallas_call(
        kernel,
        out_shape=jax.ShapeDtypeStruct((n, h_out * w_out, cout), y1ps.dtype),
        grid=(n, h_out // th),
        in_specs=in_specs,
        out_specs=out_spec,
        compiler_params=_compiler_params(need, ("parallel", "parallel")),
    )(*args)


# ----------------------------------------------------------------------------
# Glue (layout only): BN folding, padding, phase-split relayout
# ----------------------------------------------------------------------------
def _fold_bn(w, gamma, beta, mean, var, compute_dtype):
    """Fold the per-output-channel BN scale into the conv weight (output
    channels on the last axis); return (w_folded, shift)."""
    scale = gamma * lax.rsqrt(var + EPS)
    shift = beta - mean * scale
    return (w * scale).astype(compute_dtype), shift.astype(jnp.float32)


def bottleneck_forward(x_nchw, p, *, stride, dilation,
                       compute_dtype=jnp.float32):
    n, cin, h, w = x_nchw.shape
    cb = p["w1"].shape[1]
    cout = p["w3"].shape[1]
    s, d = stride, dilation
    h_out = (h - 1) // s + 1
    w_out = (w - 1) // s + 1

    x = jnp.transpose(x_nchw, (0, 2, 3, 1)).astype(compute_dtype)      # NHWC

    # conv1 (1x1) + bn1 + relu  (BN scale folded into the weight)
    w1f, b1 = _fold_bn(p["w1"], p["g1"], p["b1"], p["m1"], p["v1"],
                       compute_dtype)
    y1 = pw_conv_bn_relu(x.reshape(n * h * w, cin), w1f, b1)           # (M,Cb)

    # Phase-split padded layout for the 3x3: one fused XLA pad+transpose copy.
    # (Replaces the old HBM im2col which wrote and re-read ~9x these bytes.)
    hq = -(-(h + 2 * d) // s)
    wq = -(-(w + 2 * d) // s)
    y1p = jnp.pad(y1.reshape(n, h, w, cb),
                  ((0, 0), (d, hq * s - h - d), (d, wq * s - w - d), (0, 0)))
    y1ps = jnp.transpose(y1p.reshape(n, hq, s, wq, s, cb), (0, 2, 4, 1, 3, 5))

    w2f, b2 = _fold_bn(p["w2"].reshape(9, cb, cb),
                       p["g2"], p["b2"], p["m2"], p["v2"], compute_dtype)
    w3f, b3 = _fold_bn(p["w3"], p["g3"], p["b3"], p["m3"], p["v3"],
                       compute_dtype)

    if p.get("wd") is not None:
        wdf, bd = _fold_bn(p["wd"], p["gd"], p["bd"], p["md"], p["vd"],
                           compute_dtype)
        # TODO(synk): zero-copy strided identity via a 6-D view of x.
        xd = x[:, ::s, ::s, :].reshape(n, h_out * w_out, cin)
        out = bottleneck_tail(y1ps, w2f, b2, w3f, b3 + bd, xd, wdf,
                              h_out=h_out, w_out=w_out, stride=s, dilation=d)
    else:
        assert s == 1 and cin == cout, (
            "identity residual requires stride==1 and in_channels==out_channels")
        out = bottleneck_tail(y1ps, w2f, b2, w3f, b3,
                              x.reshape(n, h * w, cout), None,
                              h_out=h_out, w_out=w_out, stride=s, dilation=d)

    return jnp.transpose(out.reshape(n, h_out, w_out, cout), (0, 3, 1, 2))


# ----------------------------------------------------------------------------
# Pure-JAX reference (for correctness check)
# ----------------------------------------------------------------------------
def reference_forward(x_nchw, p, *, stride, dilation):
    dn = ("NHWC", "HWIO", "NHWC")
    hp = lax.Precision.HIGHEST

    def bn(y, g, b, m, v):
        return (y - m) * lax.rsqrt(v + EPS) * g + b

    x = jnp.transpose(x_nchw, (0, 2, 3, 1))
    cin = x.shape[-1]
    cb = p["w1"].shape[1]
    cout = p["w3"].shape[1]

    out = lax.conv_general_dilated(x, p["w1"].reshape(1, 1, cin, cb), (1, 1),
                                   "VALID", dimension_numbers=dn, precision=hp)
    out = jax.nn.relu(bn(out, p["g1"], p["b1"], p["m1"], p["v1"]))

    pad = dilation
    out = lax.conv_general_dilated(out, p["w2"], (stride, stride),
                                   [(pad, pad), (pad, pad)],
                                   rhs_dilation=(dilation, dilation),
                                   dimension_numbers=dn, precision=hp)
    out = jax.nn.relu(bn(out, p["g2"], p["b2"], p["m2"], p["v2"]))

    out = lax.conv_general_dilated(out, p["w3"].reshape(1, 1, cb, cout), (1, 1),
                                   "VALID", dimension_numbers=dn, precision=hp)
    out = bn(out, p["g3"], p["b3"], p["m3"], p["v3"])

    if p.get("wd") is not None:
        ident = lax.conv_general_dilated(x, p["wd"].reshape(1, 1, cin, cout),
                                         (stride, stride), "VALID",
                                         dimension_numbers=dn, precision=hp)
        ident = bn(ident, p["gd"], p["bd"], p["md"], p["vd"])
    else:
        ident = x
    return jnp.transpose(out + ident, (0, 3, 1, 2))


# ----------------------------------------------------------------------------
# Deterministic parameter init + demo
# ----------------------------------------------------------------------------
def _init_bn(key, c):
    k1, k2, k3, k4 = jax.random.split(key, 4)
    gamma = 1.0 + 0.1 * jax.random.normal(k1, (c,), jnp.float32)
    beta = 0.1 * jax.random.normal(k2, (c,), jnp.float32)
    mean = 0.1 * jax.random.normal(k3, (c,), jnp.float32)
    var = 0.5 + jax.nn.sigmoid(jax.random.normal(k4, (c,), jnp.float32))
    return gamma, beta, mean, var


def _make_params(key, cin, cb, cout, with_downsample):
    ks = jax.random.split(key, 8)
    p = {
        "w1": 0.1 * jax.random.normal(ks[0], (cin, cb), jnp.float32),
        "w2": 0.1 * jax.random.normal(ks[1], (3, 3, cb, cb), jnp.float32),
        "w3": 0.1 * jax.random.normal(ks[2], (cb, cout), jnp.float32),
    }
    p["g1"], p["b1"], p["m1"], p["v1"] = _init_bn(ks[3], cb)
    p["g2"], p["b2"], p["m2"], p["v2"] = _init_bn(ks[4], cb)
    p["g3"], p["b3"], p["m3"], p["v3"] = _init_bn(ks[5], cout)
    if with_downsample:
        p["wd"] = 0.1 * jax.random.normal(ks[6], (cin, cout), jnp.float32)
        p["gd"], p["bd"], p["md"], p["vd"] = _init_bn(ks[7], cout)
    return p


if __name__ == "__main__":
    key = jax.random.PRNGKey(0)
    configs = [
        # (name,           N, Cin, Cb, Cout, H,  W,  stride, dilation, downsample)
        ("downsample_s2",  2, 32,  16, 64,   16, 16, 2,      1,        True),
        ("identity_s1_d2", 2, 64,  16, 64,   16, 16, 1,      2,        False),
    ]
    for name, n, cin, cb, cout, h, w, s, d, ds in configs:
        kx, kp, key = jax.random.split(key, 3)
        x = jax.random.normal(kx, (n, cin, h, w), jnp.float32)
        p = _make_params(kp, cin, cb, cout, ds)

        ref = reference_forward(x, p, stride=s, dilation=d)

        # f32 path (strict check)
        fwd = jax.jit(functools.partial(bottleneck_forward, stride=s, dilation=d))
        out = jax.block_until_ready(fwd(x, p))
        h_o, w_o = (h - 1) // s + 1, (w - 1) // s + 1
        assert out.shape == (n, cout, h_o, w_o), (name, out.shape)
        max_err = float(jnp.max(jnp.abs(out - ref)))
        assert jnp.allclose(out, ref, rtol=1e-2, atol=1e-2), (name, max_err)

        # bf16 fast path (recommended on v6e/v7x: halves HBM bytes, doubles MXU
        # rate; f32 accumulation via preferred_element_type).
        fwd_bf16 = jax.jit(functools.partial(
            bottleneck_forward, stride=s, dilation=d,
            compute_dtype=jnp.bfloat16))
        out_bf16 = jax.block_until_ready(fwd_bf16(x, p)).astype(jnp.float32)
        max_err_bf16 = float(jnp.max(jnp.abs(out_bf16 - ref)))
        assert max_err_bf16 < 0.2, (name, max_err_bf16)

    print("KERNEL_OK")
</pallas_src>

<mosaic_0001>
module attributes {stable_mosaic.version = 11 : i64} {
  func.func @_pw_bn_relu_kernel(%arg0: i32, %arg1: memref<512x32xf32, #tpu.memory_space<vmem>>, %arg2: memref<32x16xf32, #tpu.memory_space<vmem>>, %arg3: memref<1x16xf32, #tpu.memory_space<vmem>>, %arg4: memref<512x16xf32, #tpu.memory_space<vmem>>) attributes {dimension_semantics = [#tpu.dimension_semantics<parallel>], iteration_bounds = array<i64: 1>, scalar_prefetch = 0 : i64, scratch_operands = 0 : i64, tpu.core_type = #tpu.core_type<tc>, window_params = [{transform_indices = @transform_0, window_bounds = array<i64: 512, 32>}, {pipeline_mode = #tpu.pipeline_mode<synchronous>, transform_indices = @transform_1, window_bounds = array<i64: 32, 16>}, {pipeline_mode = #tpu.pipeline_mode<synchronous>, transform_indices = @transform_2, window_bounds = array<i64: 1, 16>}, {transform_indices = @transform_3, window_bounds = array<i64: 512, 16>}]} {
    %c0 = arith.constant 0 : index
    %c0_0 = arith.constant 0 : index
    %0 = vector.load %arg1[%c0, %c0_0] : memref<512x32xf32, #tpu.memory_space<vmem>>, vector<512x32xf32>
    %c0_1 = arith.constant 0 : index
    %c0_2 = arith.constant 0 : index
    %1 = vector.load %arg2[%c0_1, %c0_2] : memref<32x16xf32, #tpu.memory_space<vmem>>, vector<32x16xf32>
    %cst = arith.constant dense<0.000000e+00> : vector<512x16xf32>
    %2 = tpu.matmul %0, %1, %cst {dimension_numbers = #tpu.dot_dimension_numbers<[1], [0], [0], [1], [0, 0, 1, 1], [], []>} : vector<512x32xf32>, vector<32x16xf32>, vector<512x16xf32> -> vector<512x16xf32>
    %c0_3 = arith.constant 0 : index
    %c0_4 = arith.constant 0 : index
    %3 = vector.load %arg3[%c0_3, %c0_4] : memref<1x16xf32, #tpu.memory_space<vmem>>, vector<1x16xf32>
    %4 = vector.broadcast %3 : vector<1x16xf32> to vector<512x16xf32>
    %5 = arith.addf %2, %4 : vector<512x16xf32>
    %cst_5 = arith.constant 0.000000e+00 : f32
    %6 = vector.broadcast %cst_5 : f32 to vector<512x16xf32>
    %7 = arith.maximumf %5, %6 : vector<512x16xf32>
    %c0_6 = arith.constant 0 : index
    %c0_7 = arith.constant 0 : index
    %8 = vector.load %arg4[%c0_6, %c0_7] : memref<512x16xf32, #tpu.memory_space<vmem>>, vector<512x16xf32>
    tpu.vector_store %arg4[%c0_6, %c0_7], %7 {strides = array<i32>} : memref<512x16xf32, #tpu.memory_space<vmem>>, vector<512x16xf32>,
    return
  }
  func.func @transform_0(%arg0: i32) -> (i32, i32) {
    %c0_i32 = arith.constant 0 : i32
    %c0_i32_0 = arith.constant 0 : i32
    return %arg0, %c0_i32 : i32, i32
  }
  func.func @transform_1(%arg0: i32) -> (i32, i32) {
    %c0_i32 = arith.constant 0 : i32
    %c0_i32_0 = arith.constant 0 : i32
    %c0_i32_1 = arith.constant 0 : i32
    return %c0_i32, %c0_i32_0 : i32, i32
  }
  func.func @transform_2(%arg0: i32) -> (i32, i32) {
    %c0_i32 = arith.constant 0 : i32
    %c0_i32_0 = arith.constant 0 : i32
    %c0_i32_1 = arith.constant 0 : i32
    return %c0_i32, %c0_i32_0 : i32, i32
  }
  func.func @transform_3(%arg0: i32) -> (i32, i32) {
    %c0_i32 = arith.constant 0 : i32
    %c0_i32_0 = arith.constant 0 : i32
    return %arg0, %c0_i32 : i32, i32
  }
}

module attributes {stable_mosaic.version = 11 : i64} {
  func.func @_tail_ds_kernel(%arg0: i32, %arg1: i32, %arg2: memref<1x2x2x9x9x16xf32, #tpu.memory_space<vmem>>, %arg3: memref<9x16x16xf32, #tpu.memory_space<vmem>>, %arg4: memref<1x16xf32, #tpu.memory_space<vmem>>, %arg5: memref<16x64xf32, #tpu.memory_space<vmem>>, %arg6: memref<1x64x32xf32, #tpu.memory_space<vmem>>, %arg7: memref<32x64xf32, #tpu.memory_space<vmem>>, %arg8: memref<1x64xf32, #tpu.memory_space<vmem>>, %arg9: memref<1x64x64xf32, #tpu.memory_space<vmem>>) attributes {dimension_semantics = [#tpu.dimension_semantics<parallel>, #tpu.dimension_semantics<parallel>], iteration_bounds = array<i64: 2, 1>, scalar_prefetch = 0 : i64, scratch_operands = 0 : i64, tpu.core_type = #tpu.core_type<tc>, window_params = [{transform_indices = @transform_0, window_bounds = array<i64: 1, 2, 2, 9, 9, 16>}, {pipeline_mode = #tpu.pipeline_mode<synchronous>, transform_indices = @transform_1, window_bounds = array<i64: 9, 16, 16>}, {pipeline_mode = #tpu.pipeline_mode<synchronous>, transform_indices = @transform_2, window_bounds = array<i64: 1, 16>}, {pipeline_mode = #tpu.pipeline_mode<synchronous>, transform_indices = @transform_3, window_bounds = array<i64: 16, 64>}, {transform_indices = @transform_4, window_bounds = array<i64: 1, 64, 32>}, {pipeline_mode = #tpu.pipeline_mode<synchronous>, transform_indices = @transform_5, window_bounds = array<i64: 32, 64>}, {pipeline_mode = #tpu.pipeline_mode<synchronous>, transform_indices = @transform_6, window_bounds = array<i64: 1, 64>}, {transform_indices = @transform_7, window_bounds = array<i64: 1, 64, 64>}]} {
    %c8_i32 = arith.constant 8 : i32
    %0 = arith.muli %arg1, %c8_i32 : i32
    %c0_i32 = arith.constant 0 : i32
    %1 = arith.addi %c0_i32, %0 : i32
    %c0 = arith.constant 0 : index
    %c0_0 = arith.constant 0 : index
    %c0_1 = arith.constant 0 : index
    %2 = arith.index_cast %1 : i32 to index
    %c0_2 = arith.constant 0 : index
    %c0_3 = arith.constant 0 : index
    %3 = vector.load %arg2[%c0, %c0_0, %c0_1, %2, %c0_2, %c0_3] : memref<1x2x2x9x9x16xf32, #tpu.memory_space<vmem>>, vector<1x1x1x8x8x16xf32>
    %4 = vector.shape_cast %3 : vector<1x1x1x8x8x16xf32> to vector<8x8x16xf32>
    %5 = vector.shape_cast %4 : vector<8x8x16xf32> to vector<64x16xf32>
    %c0_4 = arith.constant 0 : index
    %c0_5 = arith.constant 0 : index
    %c0_6 = arith.constant 0 : index
    %6 = vector.load %arg3[%c0_4, %c0_5, %c0_6] : memref<9x16x16xf32, #tpu.memory_space<vmem>>, vector<1x16x16xf32>
    %7 = vector.shape_cast %6 : vector<1x16x16xf32> to vector<16x16xf32>
    %cst = arith.constant dense<0.000000e+00> : vector<64x16xf32>
    %8 = tpu.matmul %5, %7, %cst {dimension_numbers = #tpu.dot_dimension_numbers<[1], [0], [0], [1], [0, 0, 1, 1], [], []>} : vector<64x16xf32>, vector<16x16xf32>, vector<64x16xf32> -> vector<64x16xf32>
    %c0_i32_7 = arith.constant 0 : i32
    %9 = arith.addi %c0_i32_7, %0 : i32
    %c0_8 = arith.constant 0 : index
    %c0_9 = arith.constant 0 : index
    %c1 = arith.constant 1 : index
    %10 = arith.index_cast %9 : i32 to index
    %c0_10 = arith.constant 0 : index
    %c0_11 = arith.constant 0 : index
    %11 = vector.load %arg2[%c0_8, %c0_9, %c1, %10, %c0_10, %c0_11] : memref<1x2x2x9x9x16xf32, #tpu.memory_space<vmem>>, vector<1x1x1x8x8x16xf32>
    %12 = vector.shape_cast %11 : vector<1x1x1x8x8x16xf32> to vector<8x8x16xf32>
    %13 = vector.shape_cast %12 : vector<8x8x16xf32> to vector<64x16xf32>
    %c1_12 = arith.constant 1 : index
    %c0_13 = arith.constant 0 : index
    %c0_14 = arith.constant 0 : index
    %14 = vector.load %arg3[%c1_12, %c0_13, %c0_14] : memref<9x16x16xf32, #tpu.memory_space<vmem>>, vector<1x16x16xf32>
    %15 = vector.shape_cast %14 : vector<1x16x16xf32> to vector<16x16xf32>
    %cst_15 = arith.constant dense<0.000000e+00> : vector<64x16xf32>
    %16 = tpu.matmul %13, %15, %cst_15 {dimension_numbers = #tpu.dot_dimension_numbers<[1], [0], [0], [1], [0, 0, 1, 1], [], []>} : vector<64x16xf32>, vector<16x16xf32>, vector<64x16xf32> -> vector<64x16xf32>
    %17 = arith.addf %8, %16 : vector<64x16xf32>
    %c0_i32_16 = arith.constant 0 : i32
    %18 = arith.addi %c0_i32_16, %0 : i32
    %c0_17 = arith.constant 0 : index
    %c0_18 = arith.constant 0 : index
    %c0_19 = arith.constant 0 : index
    %19 = arith.index_cast %18 : i32 to index
    %c1_20 = arith.constant 1 : index
    %c0_21 = arith.constant 0 : index
    %20 = vector.load %arg2[%c0_17, %c0_18, %c0_19, %19, %c1_20, %c0_21] : memref<1x2x2x9x9x16xf32, #tpu.memory_space<vmem>>, vector<1x1x1x8x8x16xf32>
    %21 = vector.shape_cast %20 : vector<1x1x1x8x8x16xf32> to vector<8x8x16xf32>
    %22 = vector.shape_cast %21 : vector<8x8x16xf32> to vector<64x16xf32>
    %c2 = arith.constant 2 : index
    %c0_22 = arith.constant 0 : index
    %c0_23 = arith.constant 0 : index
    %23 = vector.load %arg3[%c2, %c0_22, %c0_23] : memref<9x16x16xf32, #tpu.memory_space<vmem>>, vector<1x16x16xf32>
    %24 = vector.shape_cast %23 : vector<1x16x16xf32> to vector<16x16xf32>
    %cst_24 = arith.constant dense<0.000000e+00> : vector<64x16xf32>
    %25 = tpu.matmul %22, %24, %cst_24 {dimension_numbers = #tpu.dot_dimension_numbers<[1], [0], [0], [1], [0, 0, 1, 1], [], []>} : vector<64x16xf32>, vector<16x16xf32>, vector<64x16xf32> -> vector<64x16xf32>
    %26 = arith.addf %17, %25 : vector<64x16xf32>
    %c0_i32_25 = arith.constant 0 : i32
    %27 = arith.addi %c0_i32_25, %0 : i32
    %c0_26 = arith.constant 0 : index
    %c1_27 = arith.constant 1 : index
    %c0_28 = arith.constant 0 : index
    %28 = arith.index_cast %27 : i32 to index
    %c0_29 = arith.constant 0 : index
    %c0_30 = arith.constant 0 : index
    %29 = vector.load %arg2[%c0_26, %c1_27, %c0_28, %28, %c0_29, %c0_30] : memref<1x2x2x9x9x16xf32, #tpu.memory_space<vmem>>, vector<1x1x1x8x8x16xf32>
    %30 = vector.shape_cast %29 : vector<1x1x1x8x8x16xf32> to vector<8x8x16xf32>
    %31 = vector.shape_cast %30 : vector<8x8x16xf32> to vector<64x16xf32>
    %c3 = arith.constant 3 : index
    %c0_31 = arith.constant 0 : index
    %c0_32 = arith.constant 0 : index
    %32 = vector.load %arg3[%c3, %c0_31, %c0_32] : memref<9x16x16xf32, #tpu.memory_space<vmem>>, vector<1x16x16xf32>
    %33 = vector.shape_cast %32 : vector<1x16x16xf32> to vector<16x16xf32>
    %cst_33 = arith.constant dense<0.000000e+00> : vector<64x16xf32>
    %34 = tpu.matmul %31, %33, %cst_33 {dimension_numbers = #tpu.dot_dimension_numbers<[1], [0], [0], [1], [0, 0, 1, 1], [], []>} : vector<64x16xf32>, vector<16x16xf32>, vector<64x16xf32> -> vector<64x16xf32>
    %35 = arith.addf %26, %34 : vector<64x16xf32>
    %c0_i32_34 = arith.constant 0 : i32
    %36 = arith.addi %c0_i32_34, %0 : i32
    %c0_35 = arith.constant 0 : index
    %c1_36 = arith.constant 1 : index
    %c1_37 = arith.constant 1 : index
    %37 = arith.index_cast %36 : i32 to index
    %c0_38 = arith.constant 0 : index
    %c0_39 = arith.constant 0 : index
    %38 = vector.load %arg2[%c0_35, %c1_36, %c1_37, %37, %c0_38, %c0_39] : memref<1x2x2x9x9x16xf32, #tpu.memory_space<vmem>>, vector<1x1x1x8x8x16xf32>
    %39 = vector.shape_cast %38 : vector<1x1x1x8x8x16xf32> to vector<8x8x16xf32>
    %40 = vector.shape_cast %39 : vector<8x8x16xf32> to vector<64x16xf32>
    %c4 = arith.constant 4 : index
    %c0_40 = arith.constant 0 : index
    %c0_41 = arith.constant 0 : index
    %41 = vector.load %arg3[%c4, %c0_40, %c0_41] : memref<9x16x16xf32, #tpu.memory_space<vmem>>, vector<1x16x16xf32>
    %42 = vector.shape_cast %41 : vector<1x16x16xf32> to vector<16x16xf32>
    %cst_42 = arith.constant dense<0.000000e+00> : vector<64x16xf32>
    %43 = tpu.matmul %40, %42, %cst_42 {dimension_numbers = #tpu.dot_dimension_numbers<[1], [0], [0], [1], [0, 0, 1, 1], [], []>} : vector<64x16xf32>, vector<16x16xf32>, vector<64x16xf32> -> vector<64x16xf32>
    %44 = arith.addf %35, %43 : vector<64x16xf32>
    %c0_i32_43 = arith.constant 0 : i32
    %45 = arith.addi %c0_i32_43, %0 : i32
    %c0_44 = arith.constant 0 : index
    %c1_45 = arith.constant 1 : index
    %c0_46 = arith.constant 0 : index
    %46 = arith.index_cast %45 : i32 to index
    %c1_47 = arith.constant 1 : index
    %c0_48 = arith.constant 0 : index
    %47 = vector.load %arg2[%c0_44, %c1_45, %c0_46, %46, %c1_47, %c0_48] : memref<1x2x2x9x9x16xf32, #tpu.memory_space<vmem>>, vector<1x1x1x8x8x16xf32>
    %48 = vector.shape_cast %47 : vector<1x1x1x8x8x16xf32> to vector<8x8x16xf32>
    %49 = vector.shape_cast %48 : vector<8x8x16xf32> to vector<64x16xf32>
    %c5 = arith.constant 5 : index
    %c0_49 = arith.constant 0 : index
    %c0_50 = arith.constant 0 : index
    %50 = vector.load %arg3[%c5, %c0_49, %c0_50] : memref<9x16x16xf32, #tpu.memory_space<vmem>>, vector<1x16x16xf32>
    %51 = vector.shape_cast %50 : vector<1x16x16xf32> to vector<16x16xf32>
    %cst_51 = arith.constant dense<0.000000e+00> : vector<64x16xf32>
    %52 = tpu.matmul %49, %51, %cst_51 {dimension_numbers = #tpu.dot_dimension_numbers<[1], [0], [0], [1], [0, 0, 1, 1], [], []>} : vector<64x16xf32>, vector<16x16xf32>, vector<64x16xf32> -> vector<64x16xf32>
    %53 = arith.addf %44, %52 : vector<64x16xf32>
    %c1_i32 = arith.constant 1 : i32
    %54 = arith.addi %c1_i32, %0 : i32
    %c0_52 = arith.constant 0 : index
    %c0_53 = arith.constant 0 : index
    %c0_54 = arith.constant 0 : index
    %55 = arith.index_cast %54 : i32 to index
    %c0_55 = arith.constant 0 : index
    %c0_56 = arith.constant 0 : index
    %56 = vector.load %arg2[%c0_52, %c0_53, %c0_54, %55, %c0_55, %c0_56] : memref<1x2x2x9x9x16xf32, #tpu.memory_space<vmem>>, vector<1x1x1x8x8x16xf32>
    %57 = vector.shape_cast %56 : vector<1x1x1x8x8x16xf32> to vector<8x8x16xf32>
    %58 = vector.shape_cast %57 : vector<8x8x16xf32> to vector<64x16xf32>
    %c6 = arith.constant 6 : index
    %c0_57 = arith.constant 0 : index
    %c0_58 = arith.constant 0 : index
    %59 = vector.load %arg3[%c6, %c0_57, %c0_58] : memref<9x16x16xf32, #tpu.memory_space<vmem>>, vector<1x16x16xf32>
    %60 = vector.shape_cast %59 : vector<1x16x16xf32> to vector<16x16xf32>
    %cst_59 = arith.constant dense<0.000000e+00> : vector<64x16xf32>
    %61 = tpu.matmul %58, %60, %cst_59 {dimension_numbers = #tpu.dot_dimension_numbers<[1], [0], [0], [1], [0, 0, 1, 1], [], []>} : vector<64x16xf32>, vector<16x16xf32>, vector<64x16xf32> -> vector<64x16xf32>
    %62 = arith.addf %53, %61 : vector<64x16xf32>
    %c1_i32_60 = arith.constant 1 : i32
    %63 = arith.addi %c1_i32_60, %0 : i32
    %c0_61 = arith.constant 0 : index
    %c0_62 = arith.constant 0 : index
    %c1_63 = arith.constant 1 : index
    %64 = arith.index_cast %63 : i32 to index
    %c0_64 = arith.constant 0 : index
    %c0_65 = arith.constant 0 : index
    %65 = vector.load %arg2[%c0_61, %c0_62, %c1_63, %64, %c0_64, %c0_65] : memref<1x2x2x9x9x16xf32, #tpu.memory_space<vmem>>, vector<1x1x1x8x8x16xf32>
    %66 = vector.shape_cast %65 : vector<1x1x1x8x8x16xf32> to vector<8x8x16xf32>
    %67 = vector.shape_cast %66 : vector<8x8x16xf32> to vector<64x16xf32>
    %c7 = arith.constant 7 : index
    %c0_66 = arith.constant 0 : index
    %c0_67 = arith.constant 0 : index
    %68 = vector.load %arg3[%c7, %c0_66, %c0_67] : memref<9x16x16xf32, #tpu.memory_space<vmem>>, vector<1x16x16xf32>
    %69 = vector.shape_cast %68 : vector<1x16x16xf32> to vector<16x16xf32>
    %cst_68 = arith.constant dense<0.000000e+00> : vector<64x16xf32>
    %70 = tpu.matmul %67, %69, %cst_68 {dimension_numbers = #tpu.dot_dimension_numbers<[1], [0], [0], [1], [0, 0, 1, 1], [], []>} : vector<64x16xf32>, vector<16x16xf32>, vector<64x16xf32> -> vector<64x16xf32>
    %71 = arith.addf %62, %70 : vector<64x16xf32>
    %c1_i32_69 = arith.constant 1 : i32
    %72 = arith.addi %c1_i32_69, %0 : i32
    %c0_70 = arith.constant 0 : index
    %c0_71 = arith.constant 0 : index
    %c0_72 = arith.constant 0 : index
    %73 = arith.index_cast %72 : i32 to index
    %c1_73 = arith.constant 1 : index
    %c0_74 = arith.constant 0 : index
    %74 = vector.load %arg2[%c0_70, %c0_71, %c0_72, %73, %c1_73, %c0_74] : memref<1x2x2x9x9x16xf32, #tpu.memory_space<vmem>>, vector<1x1x1x8x8x16xf32>
    %75 = vector.shape_cast %74 : vector<1x1x1x8x8x16xf32> to vector<8x8x16xf32>
    %76 = vector.shape_cast %75 : vector<8x8x16xf32> to vector<64x16xf32>
    %c8 = arith.constant 8 : index
    %c0_75 = arith.constant 0 : index
    %c0_76 = arith.constant 0 : index
    %77 = vector.load %arg3[%c8, %c0_75, %c0_76] : memref<9x16x16xf32, #tpu.memory_space<vmem>>, vector<1x16x16xf32>
    %78 = vector.shape_cast %77 : vector<1x16x16xf32> to vector<16x16xf32>
    %cst_77 = arith.constant dense<0.000000e+00> : vector<64x16xf32>
    %79 = tpu.matmul %76, %78, %cst_77 {dimension_numbers = #tpu.dot_dimension_numbers<[1], [0], [0], [1], [0, 0, 1, 1], [], []>} : vector<64x16xf32>, vector<16x16xf32>, vector<64x16xf32> -> vector<64x16xf32>
    %80 = arith.addf %71, %79 : vector<64x16xf32>
    %c0_78 = arith.constant 0 : index
    %c0_79 = arith.constant 0 : index
    %81 = vector.load %arg4[%c0_78, %c0_79] : memref<1x16xf32, #tpu.memory_space<vmem>>, vector<1x16xf32>
    %82 = vector.broadcast %81 : vector<1x16xf32> to vector<64x16xf32>
    %83 = arith.addf %80, %82 : vector<64x16xf32>
    %cst_80 = arith.constant 0.000000e+00 : f32
    %84 = vector.broadcast %cst_80 : f32 to vector<64x16xf32>
    %85 = arith.maximumf %83, %84 : vector<64x16xf32>
    %c0_81 = arith.constant 0 : index
    %c0_82 = arith.constant 0 : index
    %86 = vector.load %arg5[%c0_81, %c0_82] : memref<16x64xf32, #tpu.memory_space<vmem>>, vector<16x64xf32>
    %cst_83 = arith.constant dense<0.000000e+00> : vector<64x64xf32>
    %87 = tpu.matmul %85, %86, %cst_83 {dimension_numbers = #tpu.dot_dimension_numbers<[1], [0], [0], [1], [0, 0, 1, 1], [], []>} : vector<64x16xf32>, vector<16x64xf32>, vector<64x64xf32> -> vector<64x64xf32>
    %c0_84 = arith.constant 0 : index
    %c0_85 = arith.constant 0 : index
    %c0_86 = arith.constant 0 : index
    %88 = vector.load %arg6[%c0_84, %c0_85, %c0_86] : memref<1x64x32xf32, #tpu.memory_space<vmem>>, vector<1x64x32xf32>
    %89 = vector.shape_cast %88 : vector<1x64x32xf32> to vector<64x32xf32>
    %c0_87 = arith.constant 0 : index
    %c0_88 = arith.constant 0 : index
    %90 = vector.load %arg7[%c0_87, %c0_88] : memref<32x64xf32, #tpu.memory_space<vmem>>, vector<32x64xf32>
    %cst_89 = arith.constant dense<0.000000e+00> : vector<64x64xf32>
    %91 = tpu.matmul %89, %90, %cst_89 {dimension_numbers = #tpu.dot_dimension_numbers<[1], [0], [0], [1], [0, 0, 1, 1], [], []>} : vector<64x32xf32>, vector<32x64xf32>, vector<64x64xf32> -> vector<64x64xf32>
    %92 = arith.addf %87, %91 : vector<64x64xf32>
    %c0_90 = arith.constant 0 : index
    %c0_91 = arith.constant 0 : index
    %93 = vector.load %arg8[%c0_90, %c0_91] : memref<1x64xf32, #tpu.memory_space<vmem>>, vector<1x64xf32>
    %94 = vector.broadcast %93 : vector<1x64xf32> to vector<64x64xf32>
    %95 = arith.addf %92, %94 : vector<64x64xf32>
    %c0_92 = arith.constant 0 : index
    %c0_93 = arith.constant 0 : index
    %c0_94 = arith.constant 0 : index
    %96 = vector.load %arg9[%c0_92, %c0_93, %c0_94] : memref<1x64x64xf32, #tpu.memory_space<vmem>>, vector<1x64x64xf32>
    %97 = vector.shape_cast %96 : vector<1x64x64xf32> to vector<64x64xf32>
    %98 = vector.shape_cast %95 : vector<64x64xf32> to vector<1x64x64xf32>
    tpu.vector_store %arg9[%c0_92, %c0_93, %c0_94], %98 {strides = array<i32>} : memref<1x64x64xf32, #tpu.memory_space<vmem>>, vector<1x64x64xf32>,
    return
  }
  func.func @transform_0(%arg0: i32, %arg1: i32) -> (i32, i32, i32, i32, i32, i32) {
    %c0_i32 = arith.constant 0 : i32
    %c0_i32_0 = arith.constant 0 : i32
    %c0_i32_1 = arith.constant 0 : i32
    %c0_i32_2 = arith.constant 0 : i32
    %c0_i32_3 = arith.constant 0 : i32
    %c0_i32_4 = arith.constant 0 : i32
    return %arg0, %c0_i32, %c0_i32_0, %c0_i32_1, %c0_i32_2, %c0_i32_3 : i32, i32, i32, i32, i32, i32
  }
  func.func @transform_1(%arg0: i32, %arg1: i32) -> (i32, i32, i32) {
    %c0_i32 = arith.constant 0 : i32
    %c0_i32_0 = arith.constant 0 : i32
    %c0_i32_1 = arith.constant 0 : i32
    %c0_i32_2 = arith.constant 0 : i32
    return %c0_i32, %c0_i32_0, %c0_i32_1 : i32, i32, i32
  }
  func.func @transform_2(%arg0: i32, %arg1: i32) -> (i32, i32) {
    %c0_i32 = arith.constant 0 : i32
    %c0_i32_0 = arith.constant 0 : i32
    %c0_i32_1 = arith.constant 0 : i32
    return %c0_i32, %c0_i32_0 : i32, i32
  }
  func.func @transform_3(%arg0: i32, %arg1: i32) -> (i32, i32) {
    %c0_i32 = arith.constant 0 : i32
    %c0_i32_0 = arith.constant 0 : i32
    %c0_i32_1 = arith.constant 0 : i32
    return %c0_i32, %c0_i32_0 : i32, i32
  }
  func.func @transform_4(%arg0: i32, %arg1: i32) -> (i32, i32, i32) {
    %c0_i32 = arith.constant 0 : i32
    %c0_i32_0 = arith.constant 0 : i32
    return %arg0, %arg1, %c0_i32 : i32, i32, i32
  }
  func.func @transform_5(%arg0: i32, %arg1: i32) -> (i32, i32) {
    %c0_i32 = arith.constant 0 : i32
    %c0_i32_0 = arith.constant 0 : i32
    %c0_i32_1 = arith.constant 0 : i32
    return %c0_i32, %c0_i32_0 : i32, i32
  }
  func.func @transform_6(%arg0: i32, %arg1: i32) -> (i32, i32) {
    %c0_i32 = arith.constant 0 : i32
    %c0_i32_0 = arith.constant 0 : i32
    %c0_i32_1 = arith.constant 0 : i32
    return %c0_i32, %c0_i32_0 : i32, i32
  }
  func.func @transform_7(%arg0: i32, %arg1: i32) -> (i32, i32, i32) {
    %c0_i32 = arith.constant 0 : i32
    %c0_i32_0 = arith.constant 0 : i32
    return %arg0, %arg1, %c0_i32 : i32, i32, i32
  }
}

</mosaic_0001>

<llo_original>
// kernel: bottleneck_forward.2
$region0: #{bottleneck_forward.2}
  #allocation0 [shape = 'u32[]', space=smem, size = 0x4, offset = 0x4, fixed_abs, tag = 'smem constant byte address 0x4 - core index']
  #allocation1 [shape = 'u32[72,128]{1,0:T(1,128)}', space=vmem, size = 0x9000, scoped, tag = 'internal scratch']
  %s0 = inlined_call_operand.hbm [shape: f32[512,32], index: 0, kind: input, shape index: {}]
  %s1 = inlined_call_operand.vmem [shape: f32[32,16], index: 1, kind: input, shape index: {}]
  %s2 = inlined_call_operand.vmem [shape: f32[1,16], index: 2, kind: input, shape index: {}]
  %s3 = inlined_call_operand.vmem [shape: f32[512,16], index: 3, kind: output, shape index: {}]
  %s4 = sld [smem:[#allocation0]]
  $region26: #{bottleneck_forward.2} parent=0
    _
  %s6 = ssub.s32 1, %s4
  %s7 = scalar_select 0, %s6, %s4
  $region1: #{bottleneck_forward.2} parent=0
    #allocation2 [shape = 'u8[262144]{0}', space=vmem, size = 0x40000, scoped, tag = 'input window, operand 0, single buffered']
    #allocation3 [shape = 's32[1]{0}', space=sflag, size = 0x4, scoped, tag = 'scoped memory for bottleneck_forward.2']
    %8 = vsyncpa [#allocation3], 0
    // Predicated region
    $region2: #{bottleneck_forward.2} parent=1 // pred_check
      _
    $region3: #{bottleneck_forward.2} parent=1 // pred_check_branch
      %10 = sbr.rel (0) target = $region5
    $region4: #{bottleneck_forward.2} parent=1 // pred_region
      %12 = vsyncadd [#allocation3], 0
      %s13 = sshll.u32 %s0, 4
      %s14 = int_to_ptr.hbm [resolvable:$true] %s13
      %s15 = sshll.u32 [#allocation2], 4
      %s16 = int_to_ptr.vmem [resolvable:$true] %s15
      %21 = dma.hbm_to_vmem [thread:$0]  %s14, 8192, %s16, [#allocation3], 128, 128, 8
    $region5: #{bottleneck_forward.2} parent=1 // pred_fallthru
      _
    // Predicated region
    $region6: #{bottleneck_forward.2} parent=1 // pred_check
      _
    $region7: #{bottleneck_forward.2} parent=1 // pred_check_branch
      %23 = sbr.rel (0) target = $region9
    $region8: #{bottleneck_forward.2} parent=1 // pred_region
      _
    $region9: #{bottleneck_forward.2} parent=1 // pred_fallthru
      _
    // Predicated region
    $region10: #{bottleneck_forward.2} parent=1 // pred_check
      _
    $region11: #{bottleneck_forward.2} parent=1 // pred_check_branch
      %25 = sbr.rel (0) target = $region13
    $region12: #{bottleneck_forward.2} parent=1 // pred_region
      _
    $region13: #{bottleneck_forward.2} parent=1 // pred_fallthru
      _
    // Predicated region
    $region14: #{bottleneck_forward.2} parent=1 // pred_check
      _
    $region15: #{bottleneck_forward.2} parent=1 // pred_check_branch
      %27 = sbr.rel (0) target = $region17
    $region16: #{bottleneck_forward.2} parent=1 // pred_region
      %29 = dma.done [#allocation3], 8192
    $region17: #{bottleneck_forward.2} parent=1 // pred_fallthru
      _
    %v30 = vld [vmem:[#allocation2] sm:$0xff]
    %v31 = vld [vmem:[#allocation2 + $0x8] sm:$0xff]
    %v32 = vld [vmem:[#allocation2 + $0x10] sm:$0xff]
    %v33 = vld [vmem:[#allocation2 + $0x18] sm:$0xff]
    %v34 = vld [vmem:[#allocation2 + $0x20] sm:$0xff]
    %v35 = vld [vmem:[#allocation2 + $0x28] sm:$0xff]
    %v36 = vld [vmem:[#allocation2 + $0x30] sm:$0xff]
    %v37 = vld [vmem:[#allocation2 + $0x38] sm:$0xff]
    %v38 = vld [vmem:[#allocation2 + $0x40] sm:$0xff]
    %v39 = vld [vmem:[#allocation2 + $0x48] sm:$0xff]
    %v40 = vld [vmem:[#allocation2 + $0x50] sm:$0xff]
    %v41 = vld [vmem:[#allocation2 + $0x58] sm:$0xff]
    %v42 = vld [vmem:[#allocation2 + $0x60] sm:$0xff]
    %v43 = vld [vmem:[#allocation2 + $0x68] sm:$0xff]
    %v44 = vld [vmem:[#allocation2 + $0x70] sm:$0xff]
    %v45 = vld [vmem:[#allocation2 + $0x78] sm:$0xff]
    %v46 = vld [vmem:[#allocation2 + $0x80] sm:$0xff]
    %v47 = vld [vmem:[#allocation2 + $0x88] sm:$0xff]
    %v48 = vld [vmem:[#allocation2 + $0x90] sm:$0xff]
    %v49 = vld [vmem:[#allocation2 + $0x98] sm:$0xff]
    %v50 = vld [vmem:[#allocation2 + $0xa0] sm:$0xff]
    %v51 = vld [vmem:[#allocation2 + $0xa8] sm:$0xff]
    %v52 = vld [vmem:[#allocation2 + $0xb0] sm:$0xff]
    %v53 = vld [vmem:[#allocation2 + $0xb8] sm:$0xff]
    %v54 = vld [vmem:[#allocation2 + $0xc0] sm:$0xff]
    %v55 = vld [vmem:[#allocation2 + $0xc8] sm:$0xff]
    %v56 = vld [vmem:[#allocation2 + $0xd0] sm:$0xff]
    %v57 = vld [vmem:[#allocation2 + $0xd8] sm:$0xff]
    %v58 = vld [vmem:[#allocation2 + $0xe0] sm:$0xff]
    %v59 = vld [vmem:[#allocation2 + $0xe8] sm:$0xff]
    %v60 = vld [vmem:[#allocation2 + $0xf0] sm:$0xff]
    %v61 = vld [vmem:[#allocation2 + $0xf8] sm:$0xff]
    %v62 = vld [vmem:[#allocation2 + $0x100] sm:$0xff]
    %v63 = vld [vmem:[#allocation2 + $0x108] sm:$0xff]
    %v64 = vld [vmem:[#allocation2 + $0x110] sm:$0xff]
    %v65 = vld [vmem:[#allocation2 + $0x118] sm:$0xff]
    %v66 = vld [vmem:[#allocation2 + $0x120] sm:$0xff]
    %v67 = vld [vmem:[#allocation2 + $0x128] sm:$0xff]
    %v68 = vld [vmem:[#allocation2 + $0x130] sm:$0xff]
    %v69 = vld [vmem:[#allocation2 + $0x138] sm:$0xff]
    %v70 = vld [vmem:[#allocation2 + $0x140] sm:$0xff]
    %v71 = vld [vmem:[#allocation2 + $0x148] sm:$0xff]
    %v72 = vld [vmem:[#allocation2 + $0x150] sm:$0xff]
    %v73 = vld [vmem:[#allocation2 + $0x158] sm:$0xff]
    %v74 = vld [vmem:[#allocation2 + $0x160] sm:$0xff]
    %v75 = vld [vmem:[#allocation2 + $0x168] sm:$0xff]
    %v76 = vld [vmem:[#allocation2 + $0x170] sm:$0xff]
    %v77 = vld [vmem:[#allocation2 + $0x178] sm:$0xff]
    %v78 = vld [vmem:[#allocation2 + $0x180] sm:$0xff]
    %v79 = vld [vmem:[#allocation2 + $0x188] sm:$0xff]
    %v80 = vld [vmem:[#allocation2 + $0x190] sm:$0xff]
    %v81 = vld [vmem:[#allocation2 + $0x198] sm:$0xff]
    %v82 = vld [vmem:[#allocation2 + $0x1a0] sm:$0xff]
    %v83 = vld [vmem:[#allocation2 + $0x1a8] sm:$0xff]
    %v84 = vld [vmem:[#allocation2 + $0x1b0] sm:$0xff]
    %v85 = vld [vmem:[#allocation2 + $0x1b8] sm:$0xff]
    %v86 = vld [vmem:[#allocation2 + $0x1c0] sm:$0xff]
    %v87 = vld [vmem:[#allocation2 + $0x1c8] sm:$0xff]
    %v88 = vld [vmem:[#allocation2 + $0x1d0] sm:$0xff]
    %v89 = vld [vmem:[#allocation2 + $0x1d8] sm:$0xff]
    %v90 = vld [vmem:[#allocation2 + $0x1e0] sm:$0xff]
    %v91 = vld [vmem:[#allocation2 + $0x1e8] sm:$0xff]
    %v92 = vld [vmem:[#allocation2 + $0x1f0] sm:$0xff]
    %v93 = vld [vmem:[#allocation2 + $0x1f8] sm:$0xff]
    %v94 = vld [vmem:[%s1] sm:$0xff]
    %v95 = vld [vmem:[%s1 + $0x8] sm:$0xff]
    %v96 = vld [vmem:[%s1 + $0x10] sm:$0xff]
    %v97 = vld [vmem:[%s1 + $0x18] sm:$0xff]
    %v98 = vld [vmem:[%s2] sm:$0x1]
    %v100 = vperm.slane %v98, 0
    %vm102 = vcmask 261120
    %v104 = vsel %vm102, %v30, 0
    %v107 = vsel %vm102, %v31, 0
    %v110 = vsel %vm102, %v32, 0
    %v113 = vsel %vm102, %v33, 0
    %v116 = vsel %vm102, %v34, 0
    %v119 = vsel %vm102, %v35, 0
    %v122 = vsel %vm102, %v36, 0
    %v125 = vsel %vm102, %v37, 0
    %v128 = vsel %vm102, %v38, 0
    %v131 = vsel %vm102, %v39, 0
    %v134 = vsel %vm102, %v40, 0
    %v137 = vsel %vm102, %v41, 0
    %v140 = vsel %vm102, %v42, 0
    %v143 = vsel %vm102, %v43, 0
    %v146 = vsel %vm102, %v44, 0
    %v149 = vsel %vm102, %v45, 0
    %v152 = vsel %vm102, %v46, 0
    %v155 = vsel %vm102, %v47, 0
    %v158 = vsel %vm102, %v48, 0
    %v161 = vsel %vm102, %v49, 0
    %v164 = vsel %vm102, %v50, 0
    %v167 = vsel %vm102, %v51, 0
    %v170 = vsel %vm102, %v52, 0
    %v173 = vsel %vm102, %v53, 0
    %v176 = vsel %vm102, %v54, 0
    %v179 = vsel %vm102, %v55, 0
    %v182 = vsel %vm102, %v56, 0
    %v185 = vsel %vm102, %v57, 0
    %v188 = vsel %vm102, %v58, 0
    %v191 = vsel %vm102, %v59, 0
    %v194 = vsel %vm102, %v60, 0
    %v197 = vsel %vm102, %v61, 0
    %v200 = vsel %vm102, %v62, 0
    %v203 = vsel %vm102, %v63, 0
    %v206 = vsel %vm102, %v64, 0
    %v209 = vsel %vm102, %v65, 0
    %v212 = vsel %vm102, %v66, 0
    %v215 = vsel %vm102, %v67, 0
    %v218 = vsel %vm102, %v68, 0
    %v221 = vsel %vm102, %v69, 0
    %v224 = vsel %vm102, %v70, 0
    %v227 = vsel %vm102, %v71, 0
    %v230 = vsel %vm102, %v72, 0
    %v233 = vsel %vm102, %v73, 0
    %v236 = vsel %vm102, %v74, 0
    %v239 = vsel %vm102, %v75, 0
    %v242 = vsel %vm102, %v76, 0
    %v245 = vsel %vm102, %v77, 0
    %v248 = vsel %vm102, %v78, 0
    %v251 = vsel %vm102, %v79, 0
    %v254 = vsel %vm102, %v80, 0
    %v257 = vsel %vm102, %v81, 0
    %v260 = vsel %vm102, %v82, 0
    %v263 = vsel %vm102, %v83, 0
    %v266 = vsel %vm102, %v84, 0
    %v269 = vsel %vm102, %v85, 0
    %v272 = vsel %vm102, %v86, 0
    %v275 = vsel %vm102, %v87, 0
    %v278 = vsel %vm102, %v88, 0
    %v281 = vsel %vm102, %v89, 0
    %v284 = vsel %vm102, %v90, 0
    %v287 = vsel %vm102, %v91, 0
    %v290 = vsel %vm102, %v92, 0
    %v293 = vsel %vm102, %v93, 0
    %295 = vmatpush.msra.mxu0 0.0
    %296 = vmatpush.msra.mxu0 0.0
    %297 = vmatpush.msra.mxu0 0.0
    %298 = vmatpush.msra.mxu0 0.0
    %299 = vmatpush.msra.mxu0 0.0
    %300 = vmatpush.msra.mxu0 0.0
    %301 = vmatpush.msra.mxu0 0.0
    %302 = vmatpush.msra.mxu0 0.0
    %303 = vmatpush.msra.mxu0 0.0
    %304 = vmatpush.msra.mxu0 0.0
    %305 = vmatpush.msra.mxu0 0.0
    %306 = vmatpush.msra.mxu0 0.0
    %307 = vmatpush.msra.mxu0 %v97
    %308 = vmatpush.msra.mxu0 %v96
    %309 = vmatpush.msra.mxu0 %v95
    %310 = vmatpush.msra.mxu0 %v94
    %311 = vmatmul.f32.gmra.mxu0 %v104
    %v312 = vpop.f32.mrf.mxu0
    %v313 = vadd.f32 %v100, %v312
    %314 = vmatmul.f32.gmra.mxu0 %v107
    %v315 = vpop.f32.mrf.mxu0
    %v316 = vadd.f32 %v100, %v315
    %317 = vmatmul.f32.gmra.mxu0 %v110
    %v318 = vpop.f32.mrf.mxu0
    %v319 = vadd.f32 %v100, %v318
    %320 = vmatmul.f32.gmra.mxu0 %v113
    %v321 = vpop.f32.mrf.mxu0
    %v322 = vadd.f32 %v100, %v321
    %323 = vmatmul.f32.gmra.mxu0 %v116
    %v324 = vpop.f32.mrf.mxu0
    %v325 = vadd.f32 %v100, %v324
    %326 = vmatmul.f32.gmra.mxu0 %v119
    %v327 = vpop.f32.mrf.mxu0
    %v328 = vadd.f32 %v100, %v327
    %329 = vmatmul.f32.gmra.mxu0 %v122
    %v330 = vpop.f32.mrf.mxu0
    %v331 = vadd.f32 %v100, %v330
    %332 = vmatmul.f32.gmra.mxu0 %v125
    %v333 = vpop.f32.mrf.mxu0
    %v334 = vadd.f32 %v100, %v333
    %335 = vmatmul.f32.gmra.mxu0 %v128
    %v336 = vpop.f32.mrf.mxu0
    %v337 = vadd.f32 %v100, %v336
    %338 = vmatmul.f32.gmra.mxu0 %v131
    %v339 = vpop.f32.mrf.mxu0
    %v340 = vadd.f32 %v100, %v339
    %341 = vmatmul.f32.gmra.mxu0 %v134
    %v342 = vpop.f32.mrf.mxu0
    %v343 = vadd.f32 %v100, %v342
    %344 = vmatmul.f32.gmra.mxu0 %v137
    %v345 = vpop.f32.mrf.mxu0
    %v346 = vadd.f32 %v100, %v345
    %347 = vmatmul.f32.gmra.mxu0 %v140
    %v348 = vpop.f32.mrf.mxu0
    %v349 = vadd.f32 %v100, %v348
    %350 = vmatmul.f32.gmra.mxu0 %v143
    %v351 = vpop.f32.mrf.mxu0
    %v352 = vadd.f32 %v100, %v351
    %353 = vmatmul.f32.gmra.mxu0 %v146
    %v354 = vpop.f32.mrf.mxu0
    %v355 = vadd.f32 %v100, %v354
    %356 = vmatmul.f32.gmra.mxu0 %v149
    %v357 = vpop.f32.mrf.mxu0
    %v358 = vadd.f32 %v100, %v357
    %359 = vmatmul.f32.gmra.mxu0 %v152
    %v360 = vpop.f32.mrf.mxu0
    %v361 = vadd.f32 %v100, %v360
    %362 = vmatmul.f32.gmra.mxu0 %v155
    %v363 = vpop.f32.mrf.mxu0
    %v364 = vadd.f32 %v100, %v363
    %365 = vmatmul.f32.gmra.mxu0 %v158
    %v366 = vpop.f32.mrf.mxu0
    %v367 = vadd.f32 %v100, %v366
    %368 = vmatmul.f32.gmra.mxu0 %v161
    %v369 = vpop.f32.mrf.mxu0
    %v370 = vadd.f32 %v100, %v369
    %371 = vmatmul.f32.gmra.mxu0 %v164
    %v372 = vpop.f32.mrf.mxu0
    %v373 = vadd.f32 %v100, %v372
    %374 = vmatmul.f32.gmra.mxu0 %v167
    %v375 = vpop.f32.mrf.mxu0
    %v376 = vadd.f32 %v100, %v375
    %377 = vmatmul.f32.gmra.mxu0 %v170
    %v378 = vpop.f32.mrf.mxu0
    %v379 = vadd.f32 %v100, %v378
    %380 = vmatmul.f32.gmra.mxu0 %v173
    %v381 = vpop.f32.mrf.mxu0
    %v382 = vadd.f32 %v100, %v381
    %383 = vmatmul.f32.gmra.mxu0 %v176
    %v384 = vpop.f32.mrf.mxu0
    %v385 = vadd.f32 %v100, %v384
    %386 = vmatmul.f32.gmra.mxu0 %v179
    %v387 = vpop.f32.mrf.mxu0
    %v388 = vadd.f32 %v100, %v387
    %389 = vmatmul.f32.gmra.mxu0 %v182
    %v390 = vpop.f32.mrf.mxu0
    %v391 = vadd.f32 %v100, %v390
    %392 = vmatmul.f32.gmra.mxu0 %v185
    %v393 = vpop.f32.mrf.mxu0
    %v394 = vadd.f32 %v100, %v393
    %395 = vmatmul.f32.gmra.mxu0 %v188
    %v396 = vpop.f32.mrf.mxu0
    %v397 = vadd.f32 %v100, %v396
    %398 = vmatmul.f32.gmra.mxu0 %v191
    %v399 = vpop.f32.mrf.mxu0
    %v400 = vadd.f32 %v100, %v399
    %401 = vmatmul.f32.gmra.mxu0 %v194
    %v402 = vpop.f32.mrf.mxu0
    %v403 = vadd.f32 %v100, %v402
    %404 = vmatmul.f32.gmra.mxu0 %v197
    %v405 = vpop.f32.mrf.mxu0
    %v406 = vadd.f32 %v100, %v405
    %407 = vmatmul.f32.gmra.mxu0 %v200
    %v408 = vpop.f32.mrf.mxu0
    %v409 = vadd.f32 %v100, %v408
    %410 = vmatmul.f32.gmra.mxu0 %v203
    %v411 = vpop.f32.mrf.mxu0
    %v412 = vadd.f32 %v100, %v411
    %413 = vmatmul.f32.gmra.mxu0 %v206
    %v414 = vpop.f32.mrf.mxu0
    %v415 = vadd.f32 %v100, %v414
    %416 = vmatmul.f32.gmra.mxu0 %v209
    %v417 = vpop.f32.mrf.mxu0
    %v418 = vadd.f32 %v100, %v417
    %419 = vmatmul.f32.gmra.mxu0 %v212
    %v420 = vpop.f32.mrf.mxu0
    %v421 = vadd.f32 %v100, %v420
    %422 = vmatmul.f32.gmra.mxu0 %v215
    %v423 = vpop.f32.mrf.mxu0
    %v424 = vadd.f32 %v100, %v423
    %425 = vmatmul.f32.gmra.mxu0 %v218
    %v426 = vpop.f32.mrf.mxu0
    %v427 = vadd.f32 %v100, %v426
    %428 = vmatmul.f32.gmra.mxu0 %v221
    %v429 = vpop.f32.mrf.mxu0
    %v430 = vadd.f32 %v100, %v429
    %431 = vmatmul.f32.gmra.mxu0 %v224
    %v432 = vpop.f32.mrf.mxu0
    %v433 = vadd.f32 %v100, %v432
    %434 = vmatmul.f32.gmra.mxu0 %v227
    %v435 = vpop.f32.mrf.mxu0
    %v436 = vadd.f32 %v100, %v435
    %437 = vmatmul.f32.gmra.mxu0 %v230
    %v438 = vpop.f32.mrf.mxu0
    %v439 = vadd.f32 %v100, %v438
    %440 = vmatmul.f32.gmra.mxu0 %v233
    %v441 = vpop.f32.mrf.mxu0
    %v442 = vadd.f32 %v100, %v441
    %443 = vmatmul.f32.gmra.mxu0 %v236
    %v444 = vpop.f32.mrf.mxu0
    %v445 = vadd.f32 %v100, %v444
    %446 = vmatmul.f32.gmra.mxu0 %v239
    %v447 = vpop.f32.mrf.mxu0
    %v448 = vadd.f32 %v100, %v447
    %449 = vmatmul.f32.gmra.mxu0 %v242
    %v450 = vpop.f32.mrf.mxu0
    %v451 = vadd.f32 %v100, %v450
    %452 = vmatmul.f32.gmra.mxu0 %v245
    %v453 = vpop.f32.mrf.mxu0
    %v454 = vadd.f32 %v100, %v453
    %455 = vmatmul.f32.gmra.mxu0 %v248
    %v456 = vpop.f32.mrf.mxu0
    %v457 = vadd.f32 %v100, %v456
    %458 = vmatmul.f32.gmra.mxu0 %v251
    %v459 = vpop.f32.mrf.mxu0
    %v460 = vadd.f32 %v100, %v459
    %461 = vmatmul.f32.gmra.mxu0 %v254
    %v462 = vpop.f32.mrf.mxu0
    %v463 = vadd.f32 %v100, %v462
    %464 = vmatmul.f32.gmra.mxu0 %v257
    %v465 = vpop.f32.mrf.mxu0
    %v466 = vadd.f32 %v100, %v465
    %467 = vmatmul.f32.gmra.mxu0 %v260
    %v468 = vpop.f32.mrf.mxu0
    %v469 = vadd.f32 %v100, %v468
    %470 = vmatmul.f32.gmra.mxu0 %v263
    %v471 = vpop.f32.mrf.mxu0
    %v472 = vadd.f32 %v100, %v471
    %473 = vmatmul.f32.gmra.mxu0 %v266
    %v474 = vpop.f32.mrf.mxu0
    %v475 = vadd.f32 %v100, %v474
    %476 = vmatmul.f32.gmra.mxu0 %v269
    %v477 = vpop.f32.mrf.mxu0
    %v478 = vadd.f32 %v100, %v477
    %479 = vmatmul.f32.gmra.mxu0 %v272
    %v480 = vpop.f32.mrf.mxu0
    %v481 = vadd.f32 %v100, %v480
    %482 = vmatmul.f32.gmra.mxu0 %v275
    %v483 = vpop.f32.mrf.mxu0
    %v484 = vadd.f32 %v100, %v483
    %485 = vmatmul.f32.gmra.mxu0 %v278
    %v486 = vpop.f32.mrf.mxu0
    %v487 = vadd.f32 %v100, %v486
    %488 = vmatmul.f32.gmra.mxu0 %v281
    %v489 = vpop.f32.mrf.mxu0
    %v490 = vadd.f32 %v100, %v489
    %491 = vmatmul.f32.gmra.mxu0 %v284
    %v492 = vpop.f32.mrf.mxu0
    %v493 = vadd.f32 %v100, %v492
    %494 = vmatmul.f32.gmra.mxu0 %v287
    %v495 = vpop.f32.mrf.mxu0
    %v496 = vadd.f32 %v100, %v495
    %497 = vmatmul.f32.gmra.mxu0 %v290
    %v498 = vpop.f32.mrf.mxu0
    %v499 = vadd.f32 %v100, %v498
    %500 = vmatmul.f32.gmra.mxu0 %v293
    %v501 = vpop.f32.mrf.mxu0
    %v502 = vadd.f32 %v100, %v501
    %503 = vdwg.mxu0
    %v504 = vmax.f32 %v313, 0.0
    %v505 = vmax.f32 %v316, 0.0
    %v506 = vmax.f32 %v319, 0.0
    %v507 = vmax.f32 %v322, 0.0
    %v508 = vmax.f32 %v325, 0.0
    %v509 = vmax.f32 %v328, 0.0
    %v510 = vmax.f32 %v331, 0.0
    %v511 = vmax.f32 %v334, 0.0
    %v512 = vmax.f32 %v337, 0.0
    %v513 = vmax.f32 %v340, 0.0
    %v514 = vmax.f32 %v343, 0.0
    %v515 = vmax.f32 %v346, 0.0
    %v516 = vmax.f32 %v349, 0.0
    %v517 = vmax.f32 %v352, 0.0
    %v518 = vmax.f32 %v355, 0.0
    %v519 = vmax.f32 %v358, 0.0
    %v520 = vmax.f32 %v361, 0.0
    %v521 = vmax.f32 %v364, 0.0
    %v522 = vmax.f32 %v367, 0.0
    %v523 = vmax.f32 %v370, 0.0
    %v524 = vmax.f32 %v373, 0.0
    %v525 = vmax.f32 %v376, 0.0
    %v526 = vmax.f32 %v379, 0.0
    %v527 = vmax.f32 %v382, 0.0
    %v528 = vmax.f32 %v385, 0.0
    %v529 = vmax.f32 %v388, 0.0
    %v530 = vmax.f32 %v391, 0.0
    %v531 = vmax.f32 %v394, 0.0
    %v532 = vmax.f32 %v397, 0.0
    %v533 = vmax.f32 %v400, 0.0
    %v534 = vmax.f32 %v403, 0.0
    %v535 = vmax.f32 %v406, 0.0
    %v536 = vmax.f32 %v409, 0.0
    %v537 = vmax.f32 %v412, 0.0
    %v538 = vmax.f32 %v415, 0.0
    %v539 = vmax.f32 %v418, 0.0
    %v540 = vmax.f32 %v421, 0.0
    %v541 = vmax.f32 %v424, 0.0
    %v542 = vmax.f32 %v427, 0.0
    %v543 = vmax.f32 %v430, 0.0
    %v544 = vmax.f32 %v433, 0.0
    %v545 = vmax.f32 %v436, 0.0
    %v546 = vmax.f32 %v439, 0.0
    %v547 = vmax.f32 %v442, 0.0
    %v548 = vmax.f32 %v445, 0.0
    %v549 = vmax.f32 %v448, 0.0
    %v550 = vmax.f32 %v451, 0.0
    %v551 = vmax.f32 %v454, 0.0
    %v552 = vmax.f32 %v457, 0.0
    %v553 = vmax.f32 %v460, 0.0
    %v554 = vmax.f32 %v463, 0.0
    %v555 = vmax.f32 %v466, 0.0
    %v556 = vmax.f32 %v469, 0.0
    %v557 = vmax.f32 %v472, 0.0
    %v558 = vmax.f32 %v475, 0.0
    %v559 = vmax.f32 %v478, 0.0
    %v560 = vmax.f32 %v481, 0.0
    %v561 = vmax.f32 %v484, 0.0
    %v562 = vmax.f32 %v487, 0.0
    %v563 = vmax.f32 %v490, 0.0
    %v564 = vmax.f32 %v493, 0.0
    %v565 = vmax.f32 %v496, 0.0
    %v566 = vmax.f32 %v499, 0.0
    %v567 = vmax.f32 %v502, 0.0
    %vm568 = vcmask 130048
    %569 = vst.msk [vmem:[%s3] sm:$0xff] %vm568, %v504
    %570 = vst.msk [vmem:[%s3 + $0x8] sm:$0xff] %vm568, %v505
    %571 = vst.msk [vmem:[%s3 + $0x10] sm:$0xff] %vm568, %v506
    %572 = vst.msk [vmem:[%s3 + $0x18] sm:$0xff] %vm568, %v507
    %573 = vst.msk [vmem:[%s3 + $0x20] sm:$0xff] %vm568, %v508
    %574 = vst.msk [vmem:[%s3 + $0x28] sm:$0xff] %vm568, %v509
    %575 = vst.msk [vmem:[%s3 + $0x30] sm:$0xff] %vm568, %v510
    %576 = vst.msk [vmem:[%s3 + $0x38] sm:$0xff] %vm568, %v511
    %577 = vst.msk [vmem:[%s3 + $0x40] sm:$0xff] %vm568, %v512
    %578 = vst.msk [vmem:[%s3 + $0x48] sm:$0xff] %vm568, %v513
    %579 = vst.msk [vmem:[%s3 + $0x50] sm:$0xff] %vm568, %v514
    %580 = vst.msk [vmem:[%s3 + $0x58] sm:$0xff] %vm568, %v515
    %581 = vst.msk [vmem:[%s3 + $0x60] sm:$0xff] %vm568, %v516
    %582 = vst.msk [vmem:[%s3 + $0x68] sm:$0xff] %vm568, %v517
    %583 = vst.msk [vmem:[%s3 + $0x70] sm:$0xff] %vm568, %v518
    %584 = vst.msk [vmem:[%s3 + $0x78] sm:$0xff] %vm568, %v519
    %585 = vst.msk [vmem:[%s3 + $0x80] sm:$0xff] %vm568, %v520
    %586 = vst.msk [vmem:[%s3 + $0x88] sm:$0xff] %vm568, %v521
    %587 = vst.msk [vmem:[%s3 + $0x90] sm:$0xff] %vm568, %v522
    %588 = vst.msk [vmem:[%s3 + $0x98] sm:$0xff] %vm568, %v523
    %589 = vst.msk [vmem:[%s3 + $0xa0] sm:$0xff] %vm568, %v524
    %590 = vst.msk [vmem:[%s3 + $0xa8] sm:$0xff] %vm568, %v525
    %591 = vst.msk [vmem:[%s3 + $0xb0] sm:$0xff] %vm568, %v526
    %592 = vst.msk [vmem:[%s3 + $0xb8] sm:$0xff] %vm568, %v527
    %593 = vst.msk [vmem:[%s3 + $0xc0] sm:$0xff] %vm568, %v528
    %594 = vst.msk [vmem:[%s3 + $0xc8] sm:$0xff] %vm568, %v529
    %595 = vst.msk [vmem:[%s3 + $0xd0] sm:$0xff] %vm568, %v530
    %596 = vst.msk [vmem:[%s3 + $0xd8] sm:$0xff] %vm568, %v531
    %597 = vst.msk [vmem:[%s3 + $0xe0] sm:$0xff] %vm568, %v532
    %598 = vst.msk [vmem:[%s3 + $0xe8] sm:$0xff] %vm568, %v533
    %599 = vst.msk [vmem:[%s3 + $0xf0] sm:$0xff] %vm568, %v534
    %600 = vst.msk [vmem:[%s3 + $0xf8] sm:$0xff] %vm568, %v535
    %601 = vst.msk [vmem:[%s3 + $0x100] sm:$0xff] %vm568, %v536
    %602 = vst.msk [vmem:[%s3 + $0x108] sm:$0xff] %vm568, %v537
    %603 = vst.msk [vmem:[%s3 + $0x110] sm:$0xff] %vm568, %v538
    %604 = vst.msk [vmem:[%s3 + $0x118] sm:$0xff] %vm568, %v539
    %605 = vst.msk [vmem:[%s3 + $0x120] sm:$0xff] %vm568, %v540
    %606 = vst.msk [vmem:[%s3 + $0x128] sm:$0xff] %vm568, %v541
    %607 = vst.msk [vmem:[%s3 + $0x130] sm:$0xff] %vm568, %v542
    %608 = vst.msk [vmem:[%s3 + $0x138] sm:$0xff] %vm568, %v543
    %609 = vst.msk [vmem:[%s3 + $0x140] sm:$0xff] %vm568, %v544
    %610 = vst.msk [vmem:[%s3 + $0x148] sm:$0xff] %vm568, %v545
    %611 = vst.msk [vmem:[%s3 + $0x150] sm:$0xff] %vm568, %v546
    %612 = vst.msk [vmem:[%s3 + $0x158] sm:$0xff] %vm568, %v547
    %613 = vst.msk [vmem:[%s3 + $0x160] sm:$0xff] %vm568, %v548
    %614 = vst.msk [vmem:[%s3 + $0x168] sm:$0xff] %vm568, %v549
    %615 = vst.msk [vmem:[%s3 + $0x170] sm:$0xff] %vm568, %v550
    %616 = vst.msk [vmem:[%s3 + $0x178] sm:$0xff] %vm568, %v551
    %617 = vst.msk [vmem:[%s3 + $0x180] sm:$0xff] %vm568, %v552
    %618 = vst.msk [vmem:[%s3 + $0x188] sm:$0xff] %vm568, %v553
    %619 = vst.msk [vmem:[%s3 + $0x190] sm:$0xff] %vm568, %v554
    %620 = vst.msk [vmem:[%s3 + $0x198] sm:$0xff] %vm568, %v555
    %621 = vst.msk [vmem:[%s3 + $0x1a0] sm:$0xff] %vm568, %v556
    %622 = vst.msk [vmem:[%s3 + $0x1a8] sm:$0xff] %vm568, %v557
    %623 = vst.msk [vmem:[%s3 + $0x1b0] sm:$0xff] %vm568, %v558
    %624 = vst.msk [vmem:[%s3 + $0x1b8] sm:$0xff] %vm568, %v559
    %625 = vst.msk [vmem:[%s3 + $0x1c0] sm:$0xff] %vm568, %v560
    %626 = vst.msk [vmem:[%s3 + $0x1c8] sm:$0xff] %vm568, %v561
    %627 = vst.msk [vmem:[%s3 + $0x1d0] sm:$0xff] %vm568, %v562
    %628 = vst.msk [vmem:[%s3 + $0x1d8] sm:$0xff] %vm568, %v563
    %629 = vst.msk [vmem:[%s3 + $0x1e0] sm:$0xff] %vm568, %v564
    %630 = vst.msk [vmem:[%s3 + $0x1e8] sm:$0xff] %vm568, %v565
    %631 = vst.msk [vmem:[%s3 + $0x1f0] sm:$0xff] %vm568, %v566
    %632 = vst.msk [vmem:[%s3 + $0x1f8] sm:$0xff] %vm568, %v567
    // Predicated region
    $region18: #{bottleneck_forward.2} parent=1 // pred_check
      _
    $region19: #{bottleneck_forward.2} parent=1 // pred_check_branch
      %634 = sbr.rel (0) target = $region21
    $region20: #{bottleneck_forward.2} parent=1 // pred_region
      _
    $region21: #{bottleneck_forward.2} parent=1 // pred_fallthru
      _
    // Predicated region
    $region22: #{bottleneck_forward.2} parent=1 // pred_check
      _
    $region23: #{bottleneck_forward.2} parent=1 // pred_check_branch
      %636 = sbr.rel (0) target = $region25
    $region24: #{bottleneck_forward.2} parent=1 // pred_region
      _
    $region25: #{bottleneck_forward.2} parent=1 // pred_fallthru
      _
    %637 = vsyncpa [#allocation3], 1

// kernel: bottleneck_forward.3
$region0: #{bottleneck_forward.3}
  #allocation0 [shape = 'u32[]', space=smem, size = 0x4, offset = 0x4, fixed_abs, tag = 'smem constant byte address 0x4 - core index']
  #allocation1 [shape = 'u32[72,128]{1,0:T(1,128)}', space=vmem, size = 0x9000, scoped, tag = 'internal scratch']
  %s0 = inlined_call_operand.vmem [shape: f32[2,2,2,9,9,16], index: 0, kind: input, shape index: {}]
  %s1 = inlined_call_operand.vmem [shape: f32[9,16,16], index: 1, kind: input, shape index: {}]
  %s2 = inlined_call_operand.vmem [shape: f32[1,16], index: 2, kind: input, shape index: {}]
  %s3 = inlined_call_operand.vmem [shape: f32[16,64], index: 3, kind: input, shape index: {}]
  %s4 = inlined_call_operand.vmem [shape: f32[2,64,32], index: 4, kind: input, shape index: {}]
  %s5 = inlined_call_operand.vmem [shape: f32[32,64], index: 5, kind: input, shape index: {}]
  %s6 = inlined_call_operand.vmem [shape: f32[1,64], index: 6, kind: input, shape index: {}]
  %s7 = inlined_call_operand.hbm [shape: f32[2,64,64], index: 7, kind: output, shape index: {}]
  %s8 = sld [smem:[#allocation0]]
  $region61: #{bottleneck_forward.3} parent=0
    _
  %s10 = ssub.s32 1, %s8
  %s11 = scalar_select 0, %s10, %s8
  $region1: #{bottleneck_forward.3} parent=0
    #allocation2 [shape = 'u8[65536]{0}', space=vmem, size = 0x10000, scoped, tag = 'output window, operand 0']
    #allocation3 [shape = 's32[2]{0}', space=sflag, size = 0x8, scoped, tag = 'scoped memory for bottleneck_forward.3']
    %12 = vsyncpa [#allocation3], 0
    %s13 = scalar_lea.sflag [#allocation3], 1
    %14 = vsyncpa %s13, 0
    loop: start=0, step=1, limit=4
    $region2: #{bottleneck_forward.3} parent=1 // loop_pre_header
      _
    $region3: #{bottleneck_forward.3} parent=1 // loop_header
      %s16 = sphi 0, %s20
      %p17 = scmp.ge.s32.totalorder %s16, 4
      %s23 = sphi 0, %s35
      %s24 = sphi 0, %s31
      %s25 = sphi 0, %s23
      %s26 = sphi 0, %s24
      %s27 = sphi 0, %s25
      %s28 = sphi 0, %s26
      %s38 = sphi 0, %s40
      %s41 = sphi 0, %s38
      %s42 = sphi 0, %s41
      %s58 = sphi 0, %s42
      %s62 = sphi 0, %s62
      %s64 = sphi 0, %s62
      %s65 = sphi 0, %s64
      %s79 = sphi 0, %s65
      %s83 = sphi 0, %s83
      %s85 = sphi 0, %s83
      %s86 = sphi 0, %s85
      %s100 = sphi 0, %s86
      %s104 = sphi 0, %s104
      %s106 = sphi 0, %s104
      %s107 = sphi 0, %s106
      %s121 = sphi 0, %s107
      %s129 = sphi 0, %s131
      %s132 = sphi 0, %s129
      %s133 = sphi 0, %s132
      %s149 = sphi 0, %s133
      %s153 = sphi 0, %s153
      %s155 = sphi 0, %s153
      %s156 = sphi 0, %s155
      %s170 = sphi 0, %s156
      %s174 = sphi 0, %s174
      %s176 = sphi 0, %s174
      %s177 = sphi 0, %s176
      %s191 = sphi 0, %s177
      %s199 = sphi 0, %s201
      %s202 = sphi 0, %s199
      %s203 = sphi 0, %s202
      %s219 = sphi 0, %s203
    $region4: #{bottleneck_forward.3} parent=1 // loop_header_branch
      %19 = sbr.rel (%p17) target = $region8
    $region5: #{bottleneck_forward.3} parent=1 // loop_body
      %s21 = ssub.s32 %s16, 1
      %s22 = ssub.s32 %s16, 2
      %s29 = sadd.s32 1, %s24
      %p30 = scmp.ge.s32.totalorder %s29, 1
      %s31 = scalar_select %p30, 0, %s29
      %s32 = sadd.s32 1, %s23
      %s33 = scalar_select %p30, %s32, %s23
      %p34 = scmp.ge.s32.totalorder %s33, 2
      %s35 = scalar_select %p34, 0, %s33
      %s36 = ssub.s32 %s23, %s35
      %p37 = scmp.eq.s32.totalorder %s36, 0
      %s39 = sadd.s32 %s38, 1
      %s40 = scalar_select %p37, %s38, %s39
      %p43 = pneg %p37
      %p44 = scmp.eq.s32.totalorder %s16, 1
      %p45 = por %p43, %p44
      %p46 = scmp.ne.s32.totalorder %s38, %s41
      %p47 = scmp.eq.s32.totalorder %s16, 0
      %p48 = por %p46, %p47
      %p49 = scmp.ne.s32.totalorder %s38, %s41
      %p50 = scmp.eq.s32.totalorder %s21, 1
      %p51 = por %p49, %p50
      %p52 = scmp.ne.s32.totalorder %s41, %s42
      %p53 = scmp.eq.s32.totalorder %s21, 0
      %p54 = por %p52, %p53
      %p55 = scmp.ne.s32.totalorder %s41, %s42
      %p56 = scmp.eq.s32.totalorder %s22, 1
      %p57 = por %p55, %p56
      %p59 = scmp.ne.s32.totalorder %s42, %s58
      %p60 = scmp.eq.s32.totalorder %s22, 0
      %p61 = por %p59, %p60
      %s63 = sadd.s32 %s62, 1
      %p66 = scmp.eq.s32.totalorder %s16, 1
      %p67 = scmp.ne.s32.totalorder %s62, %s64
      %p68 = scmp.eq.s32.totalorder %s16, 0
      %p69 = por %p67, %p68
      %p70 = scmp.ne.s32.totalorder %s62, %s64
      %p71 = scmp.eq.s32.totalorder %s21, 1
      %p72 = por %p70, %p71
      %p73 = scmp.ne.s32.totalorder %s64, %s65
      %p74 = scmp.eq.s32.totalorder %s21, 0
      %p75 = por %p73, %p74
      %p76 = scmp.ne.s32.totalorder %s64, %s65
      %p77 = scmp.eq.s32.totalorder %s22, 1
      %p78 = por %p76, %p77
      %p80 = scmp.ne.s32.totalorder %s65, %s79
      %p81 = scmp.eq.s32.totalorder %s22, 0
      %p82 = por %p80, %p81
      %s84 = sadd.s32 %s83, 1
      %p87 = scmp.eq.s32.totalorder %s16, 1
      %p88 = scmp.ne.s32.totalorder %s83, %s85
      %p89 = scmp.eq.s32.totalorder %s16, 0
      %p90 = por %p88, %p89
      %p91 = scmp.ne.s32.totalorder %s83, %s85
      %p92 = scmp.eq.s32.totalorder %s21, 1
      %p93 = por %p91, %p92
      %p94 = scmp.ne.s32.totalorder %s85, %s86
      %p95 = scmp.eq.s32.totalorder %s21, 0
      %p96 = por %p94, %p95
      %p97 = scmp.ne.s32.totalorder %s85, %s86
      %p98 = scmp.eq.s32.totalorder %s22, 1
      %p99 = por %p97, %p98
      %p101 = scmp.ne.s32.totalorder %s86, %s100
      %p102 = scmp.eq.s32.totalorder %s22, 0
      %p103 = por %p101, %p102
      %s105 = sadd.s32 %s104, 1
      %p108 = scmp.eq.s32.totalorder %s16, 1
      %p109 = scmp.ne.s32.totalorder %s104, %s106
      %p110 = scmp.eq.s32.totalorder %s16, 0
      %p111 = por %p109, %p110
      %p112 = scmp.ne.s32.totalorder %s104, %s106
      %p113 = scmp.eq.s32.totalorder %s21, 1
      %p114 = por %p112, %p113
      %p115 = scmp.ne.s32.totalorder %s106, %s107
      %p116 = scmp.eq.s32.totalorder %s21, 0
      %p117 = por %p115, %p116
      %p118 = scmp.ne.s32.totalorder %s106, %s107
      %p119 = scmp.eq.s32.totalorder %s22, 1
      %p120 = por %p118, %p119
      %p122 = scmp.ne.s32.totalorder %s107, %s121
      %p123 = scmp.eq.s32.totalorder %s22, 0
      %p124 = por %p122, %p123
      %s125 = ssub.s32 %s23, %s35
      %s126 = ssub.s32 %s24, %s31
      %s127 = sor.u32 %s125, %s126
      %p128 = scmp.eq.s32.totalorder %s127, 0
      %s130 = sadd.s32 %s129, 1
      %s131 = scalar_select %p128, %s129, %s130
      %p134 = pneg %p128
      %p135 = scmp.eq.s32.totalorder %s16, 1
      %p136 = por %p134, %p135
      %p137 = scmp.ne.s32.totalorder %s129, %s132
      %p138 = scmp.eq.s32.totalorder %s16, 0
      %p139 = por %p137, %p138
      %p140 = scmp.ne.s32.totalorder %s129, %s132
      %p141 = scmp.eq.s32.totalorder %s21, 1
      %p142 = por %p140, %p141
      %p143 = scmp.ne.s32.totalorder %s132, %s133
      %p144 = scmp.eq.s32.totalorder %s21, 0
      %p145 = por %p143, %p144
      %p146 = scmp.ne.s32.totalorder %s132, %s133
      %p147 = scmp.eq.s32.totalorder %s22, 1
      %p148 = por %p146, %p147
      %p150 = scmp.ne.s32.totalorder %s133, %s149
      %p151 = scmp.eq.s32.totalorder %s22, 0
      %p152 = por %p150, %p151
      %s154 = sadd.s32 %s153, 1
      %p157 = scmp.eq.s32.totalorder %s16, 1
      %p158 = scmp.ne.s32.totalorder %s153, %s155
      %p159 = scmp.eq.s32.totalorder %s16, 0
      %p160 = por %p158, %p159
      %p161 = scmp.ne.s32.totalorder %s153, %s155
      %p162 = scmp.eq.s32.totalorder %s21, 1
      %p163 = por %p161, %p162
      %p164 = scmp.ne.s32.totalorder %s155, %s156
      %p165 = scmp.eq.s32.totalorder %s21, 0
      %p166 = por %p164, %p165
      %p167 = scmp.ne.s32.totalorder %s155, %s156
      %p168 = scmp.eq.s32.totalorder %s22, 1
      %p169 = por %p167, %p168
      %p171 = scmp.ne.s32.totalorder %s156, %s170
      %p172 = scmp.eq.s32.totalorder %s22, 0
      %p173 = por %p171, %p172
      %s175 = sadd.s32 %s174, 1
      %p178 = scmp.eq.s32.totalorder %s16, 1
      %p179 = scmp.ne.s32.totalorder %s174, %s176
      %p180 = scmp.eq.s32.totalorder %s16, 0
      %p181 = por %p179, %p180
      %p182 = scmp.ne.s32.totalorder %s174, %s176
      %p183 = scmp.eq.s32.totalorder %s21, 1
      %p184 = por %p182, %p183
      %p185 = scmp.ne.s32.totalorder %s176, %s177
      %p186 = scmp.eq.s32.totalorder %s21, 0
      %p187 = por %p185, %p186
      %p188 = scmp.ne.s32.totalorder %s176, %s177
      %p189 = scmp.eq.s32.totalorder %s22, 1
      %p190 = por %p188, %p189
      %p192 = scmp.ne.s32.totalorder %s177, %s191
      %p193 = scmp.eq.s32.totalorder %s22, 0
      %p194 = por %p192, %p193
      %s195 = ssub.s32 %s23, %s35
      %s196 = ssub.s32 %s24, %s31
      %s197 = sor.u32 %s195, %s196
      %p198 = scmp.eq.s32.totalorder %s197, 0
      %s200 = sadd.s32 %s199, 1
      %s201 = scalar_select %p198, %s199, %s200
      %p204 = pneg %p198
      %p205 = scmp.eq.s32.totalorder %s16, 1
      %p206 = por %p204, %p205
      %p207 = scmp.ne.s32.totalorder %s199, %s202
      %p208 = scmp.eq.s32.totalorder %s16, 0
      %p209 = por %p207, %p208
      %p210 = scmp.ne.s32.totalorder %s199, %s202
      %p211 = scmp.eq.s32.totalorder %s21, 1
      %p212 = por %p210, %p211
      %p213 = scmp.ne.s32.totalorder %s202, %s203
      %p214 = scmp.eq.s32.totalorder %s21, 0
      %p215 = por %p213, %p214
      %p216 = scmp.ne.s32.totalorder %s202, %s203
      %p217 = scmp.eq.s32.totalorder %s22, 1
      %p218 = por %p216, %p217
      %p220 = scmp.ne.s32.totalorder %s203, %s219
      %p221 = scmp.eq.s32.totalorder %s22, 0
      %p222 = por %p220, %p221
      %p223 = scmp.le.s32.totalorder 1, %s16
      %p224 = scmp.lt.s32.totalorder %s16, 3
      %p225 = pnand %p223, %p224
      %p226 = pneg %p225
      // Predicated region
      $region9: #{bottleneck_forward.3} parent=5 // pred_check
        _
      $region10: #{bottleneck_forward.3} parent=5 // pred_check_branch
        %228 = sbr.rel (%p225) target = $region12
      $region11: #{bottleneck_forward.3} parent=5 // pred_region
        %s229 = ssub.s32 %s16, 1
        // Predicated region
        $region13: #{bottleneck_forward.3} parent=11 // pred_check
          %p230 = pneg %p75
        $region14: #{bottleneck_forward.3} parent=11 // pred_check_branch
          %232 = sbr.rel (%p230) target = $region16
        $region15: #{bottleneck_forward.3} parent=11 // pred_region
          _
        $region16: #{bottleneck_forward.3} parent=11 // pred_fallthru
          _
        // Predicated region
        $region17: #{bottleneck_forward.3} parent=11 // pred_check
          %p233 = pneg %p96
        $region18: #{bottleneck_forward.3} parent=11 // pred_check_branch
          %235 = sbr.rel (%p233) target = $region20
        $region19: #{bottleneck_forward.3} parent=11 // pred_region
          _
        $region20: #{bottleneck_forward.3} parent=11 // pred_fallthru
          _
        // Predicated region
        $region21: #{bottleneck_forward.3} parent=11 // pred_check
          %p236 = pneg %p117
        $region22: #{bottleneck_forward.3} parent=11 // pred_check_branch
          %238 = sbr.rel (%p236) target = $region24
        $region23: #{bottleneck_forward.3} parent=11 // pred_region
          _
        $region24: #{bottleneck_forward.3} parent=11 // pred_fallthru
          _
        // Predicated region
        $region25: #{bottleneck_forward.3} parent=11 // pred_check
          %p239 = pneg %p166
        $region26: #{bottleneck_forward.3} parent=11 // pred_check_branch
          %241 = sbr.rel (%p239) target = $region28
        $region27: #{bottleneck_forward.3} parent=11 // pred_region
          _
        $region28: #{bottleneck_forward.3} parent=11 // pred_fallthru
          _
        // Predicated region
        $region29: #{bottleneck_forward.3} parent=11 // pred_check
          %p242 = pneg %p187
        $region30: #{bottleneck_forward.3} parent=11 // pred_check_branch
          %244 = sbr.rel (%p242) target = $region32
        $region31: #{bottleneck_forward.3} parent=11 // pred_region
          _
        $region32: #{bottleneck_forward.3} parent=11 // pred_fallthru
          _
      $region12: #{bottleneck_forward.3} parent=5 // pred_fallthru
        _
      %p245 = scmp.lt.s32.totalorder %s16, 2
      // Predicated region
      $region33: #{bottleneck_forward.3} parent=5 // pred_check
        %p246 = pneg %p245
      $region34: #{bottleneck_forward.3} parent=5 // pred_check_branch
        %248 = sbr.rel (%p246) target = $region36
      $region35: #{bottleneck_forward.3} parent=5 // pred_region
        // Predicated region
        $region37: #{bottleneck_forward.3} parent=35 // pred_check
          %p249 = pneg %p48
        $region38: #{bottleneck_forward.3} parent=35 // pred_check_branch
          %251 = sbr.rel (%p249) target = $region40
        $region39: #{bottleneck_forward.3} parent=35 // pred_region
          %p252 = scmp.lt.s32.totalorder %s23, 1
          %s253 = scalar_select %p252, %s23, 1
          %s254 = smul.addr %s253, 72
          %s255 = smul.addr %s254, 8
          %s256 = scalar_lea.vmem %s0, %s255
        $region40: #{bottleneck_forward.3} parent=35 // pred_fallthru
          _
        // Predicated region
        $region41: #{bottleneck_forward.3} parent=35 // pred_check
          %p257 = pneg %p139
        $region42: #{bottleneck_forward.3} parent=35 // pred_check_branch
          %259 = sbr.rel (%p257) target = $region44
        $region43: #{bottleneck_forward.3} parent=35 // pred_region
          %s260 = smul.u32 8, %s24
          %p261 = scmp.lt.s32.totalorder %s23, 1
          %s262 = scalar_select %p261, %s23, 1
          %p263 = scmp.lt.s32.totalorder %s260, 7
          %s264 = scalar_select %p263, %s260, 7
          %s265 = smul.addr %s262, 8
          %s266 = sadd.s32 %s264, %s265
          %s267 = smul.addr %s266, 8
          %s268 = scalar_lea.vmem %s4, %s267
          %s269 = smul.u32 8, %s24
        $region44: #{bottleneck_forward.3} parent=35 // pred_fallthru
          _
      $region36: #{bottleneck_forward.3} parent=5 // pred_fallthru
        _
      %p270 = scmp.le.s32.totalorder 1, %s16
      %p271 = scmp.lt.s32.totalorder %s16, 3
      %p272 = pnand %p270, %p271
      %p273 = pneg %p272
      // Predicated region
      $region45: #{bottleneck_forward.3} parent=5 // pred_check
        _
      $region46: #{bottleneck_forward.3} parent=5 // pred_check_branch
        %275 = sbr.rel (%p272) target = $region48
      $region47: #{bottleneck_forward.3} parent=5 // pred_region
        %s276 = ssub.s32 %s16, 1
        %p277 = scmp.lt.s32.totalorder %s25, 1
        %s278 = scalar_select %p277, %s25, 1
        %s279 = smul.addr %s278, 72
        %s280 = smul.addr %s279, 8
        %s281 = scalar_lea.vmem %s0, %s280
        %p282 = pneg %p54
        %p283 = pneg %p51
        %p284 = pneg %p75
        %p285 = pneg %p72
        %p286 = pneg %p96
        %p287 = pneg %p93
        %p288 = pneg %p117
        %p289 = pneg %p114
        %s290 = smul.u32 8, %s26
        %p291 = scmp.lt.s32.totalorder %s25, 1
        %s292 = scalar_select %p291, %s25, 1
        %p293 = scmp.lt.s32.totalorder %s290, 7
        %s294 = scalar_select %p293, %s290, 7
        %s295 = smul.addr %s292, 8
        %s296 = sadd.s32 %s294, %s295
        %s297 = smul.addr %s296, 8
        %s298 = scalar_lea.vmem %s4, %s297
        %p299 = pneg %p145
        %p300 = pneg %p142
        %p301 = pneg %p166
        %p302 = pneg %p163
        %p303 = pneg %p187
        %p304 = pneg %p184
        %p305 = pneg %p215
        %p306 = pneg %p212
        %s307 = sand.u32 %s202, 1
        %s308 = scalar_lea.sflag [#allocation3], %s307
        %s309 = sand.u32 %s202, 1
        %s310 = smul.addr %s309, 64
        %s311 = scalar_lea.vmem [#allocation2], %s310
        %p312 = scmp.lt.s32.totalorder %s25, 1
        %s313 = scalar_select %p312, %s25, 1
        %s314 = smul.addr %s313, 72
        %s315 = smul.addr %s314, 8
        %s316 = scalar_lea.vmem %s0, %s315
        %s317 = smul.u32 8, %s26
        %p318 = scmp.lt.s32.totalorder %s25, 1
        %s319 = scalar_select %p318, %s25, 1
        %p320 = scmp.lt.s32.totalorder %s317, 7
        %s321 = scalar_select %p320, %s317, 7
        %s322 = smul.addr %s319, 8
        %s323 = sadd.s32 %s321, %s322
        %s324 = smul.addr %s323, 8
        %s325 = scalar_lea.vmem %s4, %s324
        %s326 = smul.u32 8, %s26
        %s327 = smul.u32 8, %s26
        %s328 = smul.u32 %s26, 8
        %s329 = smul.u32 %s328, 16
        %s330 = scalar_lea.vmem %s316, %s329
        %v331 = vld [vmem:[%s330] sm:$0xff]
        %v332 = vld [vmem:[%s330 + $0x10] sm:$0xff]
        %v333 = vld [vmem:[%s330 + $0x20] sm:$0xff]
        %v334 = vld [vmem:[%s330 + $0x30] sm:$0xff]
        %v335 = vld [vmem:[%s330 + $0x40] sm:$0xff]
        %v336 = vld [vmem:[%s330 + $0x50] sm:$0xff]
        %v337 = vld [vmem:[%s330 + $0x60] sm:$0xff]
        %v338 = vld [vmem:[%s330 + $0x70] sm:$0xff]
        %v339 = vld [vmem:[%s1] sm:$0xff]
        %v340 = vld [vmem:[%s1 + $0x8] sm:$0xff]
        %s341 = sadd.s32 %s329, 144
        %s342 = scalar_lea.vmem %s316, %s341
        %v343 = vld [vmem:[%s342] sm:$0xff]
        %v344 = vld [vmem:[%s342 + $0x10] sm:$0xff]
        %v345 = vld [vmem:[%s342 + $0x20] sm:$0xff]
        %v346 = vld [vmem:[%s342 + $0x30] sm:$0xff]
        %v347 = vld [vmem:[%s342 + $0x40] sm:$0xff]
        %v348 = vld [vmem:[%s342 + $0x50] sm:$0xff]
        %v349 = vld [vmem:[%s342 + $0x60] sm:$0xff]
        %v350 = vld [vmem:[%s342 + $0x70] sm:$0xff]
        %s351 = scalar_lea.vmem %s1, 16
        %v352 = vld [vmem:[%s351] sm:$0xff]
        %v353 = vld [vmem:[%s351 + $0x8] sm:$0xff]
        %vm354 = vcmask 130048
        %v356 = vsel %vm354, %v343, 0
        %v359 = vsel %vm354, %v344, 0
        %v362 = vsel %vm354, %v345, 0
        %v365 = vsel %vm354, %v346, 0
        %v368 = vsel %vm354, %v347, 0
        %v371 = vsel %vm354, %v348, 0
        %v374 = vsel %vm354, %v349, 0
        %v377 = vsel %vm354, %v350, 0
        %379 = vmatpush.msra.mxu0 0.0
        %380 = vmatpush.msra.mxu0 0.0
        %381 = vmatpush.msra.mxu0 0.0
        %382 = vmatpush.msra.mxu0 0.0
        %383 = vmatpush.msra.mxu0 0.0
        %384 = vmatpush.msra.mxu0 0.0
        %385 = vmatpush.msra.mxu0 0.0
        %386 = vmatpush.msra.mxu0 0.0
        %387 = vmatpush.msra.mxu0 0.0
        %388 = vmatpush.msra.mxu0 0.0
        %389 = vmatpush.msra.mxu0 0.0
        %390 = vmatpush.msra.mxu0 0.0
        %391 = vmatpush.msra.mxu0 0.0
        %392 = vmatpush.msra.mxu0 0.0
        %393 = vmatpush.msra.mxu0 %v353
        %394 = vmatpush.msra.mxu0 %v352
        %395 = vmatmul.f32.gmra.mxu0 %v356
        %v396 = vpop.f32.mrf.mxu0
        %v397 = vadd.f32 0.0, %v396
        %398 = vmatmul.f32.gmra.mxu0 %v359
        %v399 = vpop.f32.mrf.mxu0
        %v400 = vadd.f32 0.0, %v399
        %401 = vmatmul.f32.gmra.mxu0 %v362
        %v402 = vpop.f32.mrf.mxu0
        %v403 = vadd.f32 0.0, %v402
        %404 = vmatmul.f32.gmra.mxu0 %v365
        %v405 = vpop.f32.mrf.mxu0
        %v406 = vadd.f32 0.0, %v405
        %407 = vmatmul.f32.gmra.mxu0 %v368
        %v408 = vpop.f32.mrf.mxu0
        %v409 = vadd.f32 0.0, %v408
        %410 = vmatmul.f32.gmra.mxu0 %v371
        %v411 = vpop.f32.mrf.mxu0
        %v412 = vadd.f32 0.0, %v411
        %413 = vmatmul.f32.gmra.mxu0 %v374
        %v414 = vpop.f32.mrf.mxu0
        %v415 = vadd.f32 0.0, %v414
        %416 = vmatmul.f32.gmra.mxu0 %v377
        %v417 = vpop.f32.mrf.mxu0
        %v418 = vadd.f32 0.0, %v417
        %419 = vdwg.mxu0
        %v421 = vsel %vm354, %v331, 0
        %v424 = vsel %vm354, %v332, 0
        %v427 = vsel %vm354, %v333, 0
        %v430 = vsel %vm354, %v334, 0
        %v433 = vsel %vm354, %v335, 0
        %v436 = vsel %vm354, %v336, 0
        %v439 = vsel %vm354, %v337, 0
        %v442 = vsel %vm354, %v338, 0
        %444 = vmatpush.msra.mxu0 0.0
        %445 = vmatpush.msra.mxu0 0.0
        %446 = vmatpush.msra.mxu0 0.0
        %447 = vmatpush.msra.mxu0 0.0
        %448 = vmatpush.msra.mxu0 0.0
        %449 = vmatpush.msra.mxu0 0.0
        %450 = vmatpush.msra.mxu0 0.0
        %451 = vmatpush.msra.mxu0 0.0
        %452 = vmatpush.msra.mxu0 0.0
        %453 = vmatpush.msra.mxu0 0.0
        %454 = vmatpush.msra.mxu0 0.0
        %455 = vmatpush.msra.mxu0 0.0
        %456 = vmatpush.msra.mxu0 0.0
        %457 = vmatpush.msra.mxu0 0.0
        %458 = vmatpush.msra.mxu0 %v340
        %459 = vmatpush.msra.mxu0 %v339
        %460 = vmatmul.f32.gmra.mxu0 %v421
        %v461 = vpop.f32.mrf.mxu0
        %v462 = vadd.f32 %v397, %v461
        %463 = vmatmul.f32.gmra.mxu0 %v424
        %v464 = vpop.f32.mrf.mxu0
        %v465 = vadd.f32 %v400, %v464
        %466 = vmatmul.f32.gmra.mxu0 %v427
        %v467 = vpop.f32.mrf.mxu0
        %v468 = vadd.f32 %v403, %v467
        %469 = vmatmul.f32.gmra.mxu0 %v430
        %v470 = vpop.f32.mrf.mxu0
        %v471 = vadd.f32 %v406, %v470
        %472 = vmatmul.f32.gmra.mxu0 %v433
        %v473 = vpop.f32.mrf.mxu0
        %v474 = vadd.f32 %v409, %v473
        %475 = vmatmul.f32.gmra.mxu0 %v436
        %v476 = vpop.f32.mrf.mxu0
        %v477 = vadd.f32 %v412, %v476
        %478 = vmatmul.f32.gmra.mxu0 %v439
        %v479 = vpop.f32.mrf.mxu0
        %v480 = vadd.f32 %v415, %v479
        %481 = vmatmul.f32.gmra.mxu0 %v442
        %v482 = vpop.f32.mrf.mxu0
        %v483 = vadd.f32 %v418, %v482
        %484 = vdwg.mxu0
        %v485 = vld [vmem:[%s330 + $0x1] sm:$0xff]
        %v486 = vld [vmem:[%s330 + $0x11] sm:$0xff]
        %v487 = vld [vmem:[%s330 + $0x21] sm:$0xff]
        %v488 = vld [vmem:[%s330 + $0x31] sm:$0xff]
        %v489 = vld [vmem:[%s330 + $0x41] sm:$0xff]
        %v490 = vld [vmem:[%s330 + $0x51] sm:$0xff]
        %v491 = vld [vmem:[%s330 + $0x61] sm:$0xff]
        %v492 = vld [vmem:[%s330 + $0x71] sm:$0xff]
        %s493 = scalar_lea.vmem %s1, 32
        %v494 = vld [vmem:[%s493] sm:$0xff]
        %v495 = vld [vmem:[%s493 + $0x8] sm:$0xff]
        %v497 = vsel %vm354, %v485, 0
        %v500 = vsel %vm354, %v486, 0
        %v503 = vsel %vm354, %v487, 0
        %v506 = vsel %vm354, %v488, 0
        %v509 = vsel %vm354, %v489, 0
        %v512 = vsel %vm354, %v490, 0
        %v515 = vsel %vm354, %v491, 0
        %v518 = vsel %vm354, %v492, 0
        %520 = vmatpush.msra.mxu0 0.0
        %521 = vmatpush.msra.mxu0 0.0
        %522 = vmatpush.msra.mxu0 0.0
        %523 = vmatpush.msra.mxu0 0.0
        %524 = vmatpush.msra.mxu0 0.0
        %525 = vmatpush.msra.mxu0 0.0
        %526 = vmatpush.msra.mxu0 0.0
        %527 = vmatpush.msra.mxu0 0.0
        %528 = vmatpush.msra.mxu0 0.0
        %529 = vmatpush.msra.mxu0 0.0
        %530 = vmatpush.msra.mxu0 0.0
        %531 = vmatpush.msra.mxu0 0.0
        %532 = vmatpush.msra.mxu0 0.0
        %533 = vmatpush.msra.mxu0 0.0
        %534 = vmatpush.msra.mxu0 %v495
        %535 = vmatpush.msra.mxu0 %v494
        %536 = vmatmul.f32.gmra.mxu0 %v497
        %v537 = vpop.f32.mrf.mxu0
        %v538 = vadd.f32 0.0, %v537
        %539 = vmatmul.f32.gmra.mxu0 %v500
        %v540 = vpop.f32.mrf.mxu0
        %v541 = vadd.f32 0.0, %v540
        %542 = vmatmul.f32.gmra.mxu0 %v503
        %v543 = vpop.f32.mrf.mxu0
        %v544 = vadd.f32 0.0, %v543
        %545 = vmatmul.f32.gmra.mxu0 %v506
        %v546 = vpop.f32.mrf.mxu0
        %v547 = vadd.f32 0.0, %v546
        %548 = vmatmul.f32.gmra.mxu0 %v509
        %v549 = vpop.f32.mrf.mxu0
        %v550 = vadd.f32 0.0, %v549
        %551 = vmatmul.f32.gmra.mxu0 %v512
        %v552 = vpop.f32.mrf.mxu0
        %v553 = vadd.f32 0.0, %v552
        %554 = vmatmul.f32.gmra.mxu0 %v515
        %v555 = vpop.f32.mrf.mxu0
        %v556 = vadd.f32 0.0, %v555
        %557 = vmatmul.f32.gmra.mxu0 %v518
        %v558 = vpop.f32.mrf.mxu0
        %v559 = vadd.f32 0.0, %v558
        %560 = vdwg.mxu0
        %v561 = vadd.f32 %v462, %v538
        %v562 = vadd.f32 %v465, %v541
        %v563 = vadd.f32 %v468, %v544
        %v564 = vadd.f32 %v471, %v547
        %v565 = vadd.f32 %v474, %v550
        %v566 = vadd.f32 %v477, %v553
        %v567 = vadd.f32 %v480, %v556
        %v568 = vadd.f32 %v483, %v559
        %s569 = sadd.s32 %s329, 288
        %s570 = scalar_lea.vmem %s316, %s569
        %v571 = vld [vmem:[%s570] sm:$0xff]
        %v572 = vld [vmem:[%s570 + $0x10] sm:$0xff]
        %v573 = vld [vmem:[%s570 + $0x20] sm:$0xff]
        %v574 = vld [vmem:[%s570 + $0x30] sm:$0xff]
        %v575 = vld [vmem:[%s570 + $0x40] sm:$0xff]
        %v576 = vld [vmem:[%s570 + $0x50] sm:$0xff]
        %v577 = vld [vmem:[%s570 + $0x60] sm:$0xff]
        %v578 = vld [vmem:[%s570 + $0x70] sm:$0xff]
        %s579 = scalar_lea.vmem %s1, 48
        %v580 = vld [vmem:[%s579] sm:$0xff]
        %v581 = vld [vmem:[%s579 + $0x8] sm:$0xff]
        %v583 = vsel %vm354, %v571, 0
        %v586 = vsel %vm354, %v572, 0
        %v589 = vsel %vm354, %v573, 0
        %v592 = vsel %vm354, %v574, 0
        %v595 = vsel %vm354, %v575, 0
        %v598 = vsel %vm354, %v576, 0
        %v601 = vsel %vm354, %v577, 0
        %v604 = vsel %vm354, %v578, 0
        %606 = vmatpush.msra.mxu0 0.0
        %607 = vmatpush.msra.mxu0 0.0
        %608 = vmatpush.msra.mxu0 0.0
        %609 = vmatpush.msra.mxu0 0.0
        %610 = vmatpush.msra.mxu0 0.0
        %611 = vmatpush.msra.mxu0 0.0
        %612 = vmatpush.msra.mxu0 0.0
        %613 = vmatpush.msra.mxu0 0.0
        %614 = vmatpush.msra.mxu0 0.0
        %615 = vmatpush.msra.mxu0 0.0
        %616 = vmatpush.msra.mxu0 0.0
        %617 = vmatpush.msra.mxu0 0.0
        %618 = vmatpush.msra.mxu0 0.0
        %619 = vmatpush.msra.mxu0 0.0
        %620 = vmatpush.msra.mxu0 %v581
        %621 = vmatpush.msra.mxu0 %v580
        %622 = vmatmul.f32.gmra.mxu0 %v583
        %v623 = vpop.f32.mrf.mxu0
        %v624 = vadd.f32 0.0, %v623
        %625 = vmatmul.f32.gmra.mxu0 %v586
        %v626 = vpop.f32.mrf.mxu0
        %v627 = vadd.f32 0.0, %v626
        %628 = vmatmul.f32.gmra.mxu0 %v589
        %v629 = vpop.f32.mrf.mxu0
        %v630 = vadd.f32 0.0, %v629
        %631 = vmatmul.f32.gmra.mxu0 %v592
        %v632 = vpop.f32.mrf.mxu0
        %v633 = vadd.f32 0.0, %v632
        %634 = vmatmul.f32.gmra.mxu0 %v595
        %v635 = vpop.f32.mrf.mxu0
        %v636 = vadd.f32 0.0, %v635
        %637 = vmatmul.f32.gmra.mxu0 %v598
        %v638 = vpop.f32.mrf.mxu0
        %v639 = vadd.f32 0.0, %v638
        %640 = vmatmul.f32.gmra.mxu0 %v601
        %v641 = vpop.f32.mrf.mxu0
        %v642 = vadd.f32 0.0, %v641
        %643 = vmatmul.f32.gmra.mxu0 %v604
        %v644 = vpop.f32.mrf.mxu0
        %v645 = vadd.f32 0.0, %v644
        %646 = vdwg.mxu0
        %v647 = vadd.f32 %v561, %v624
        %v648 = vadd.f32 %v562, %v627
        %v649 = vadd.f32 %v563, %v630
        %v650 = vadd.f32 %v564, %v633
        %v651 = vadd.f32 %v565, %v636
        %v652 = vadd.f32 %v566, %v639
        %v653 = vadd.f32 %v567, %v642
        %v654 = vadd.f32 %v568, %v645
        %s655 = sadd.s32 %s341, 288
        %s656 = scalar_lea.vmem %s316, %s655
        %v657 = vld [vmem:[%s656] sm:$0xff]
        %v658 = vld [vmem:[%s656 + $0x10] sm:$0xff]
        %v659 = vld [vmem:[%s656 + $0x20] sm:$0xff]
        %v660 = vld [vmem:[%s656 + $0x30] sm:$0xff]
        %v661 = vld [vmem:[%s656 + $0x40] sm:$0xff]
        %v662 = vld [vmem:[%s656 + $0x50] sm:$0xff]
        %v663 = vld [vmem:[%s656 + $0x60] sm:$0xff]
        %v664 = vld [vmem:[%s656 + $0x70] sm:$0xff]
        %s665 = scalar_lea.vmem %s1, 64
        %v666 = vld [vmem:[%s665] sm:$0xff]
        %v667 = vld [vmem:[%s665 + $0x8] sm:$0xff]
        %v669 = vsel %vm354, %v657, 0
        %v672 = vsel %vm354, %v658, 0
        %v675 = vsel %vm354, %v659, 0
        %v678 = vsel %vm354, %v660, 0
        %v681 = vsel %vm354, %v661, 0
        %v684 = vsel %vm354, %v662, 0
        %v687 = vsel %vm354, %v663, 0
        %v690 = vsel %vm354, %v664, 0
        %692 = vmatpush.msra.mxu0 0.0
        %693 = vmatpush.msra.mxu0 0.0
        %694 = vmatpush.msra.mxu0 0.0
        %695 = vmatpush.msra.mxu0 0.0
        %696 = vmatpush.msra.mxu0 0.0
        %697 = vmatpush.msra.mxu0 0.0
        %698 = vmatpush.msra.mxu0 0.0
        %699 = vmatpush.msra.mxu0 0.0
        %700 = vmatpush.msra.mxu0 0.0
        %701 = vmatpush.msra.mxu0 0.0
        %702 = vmatpush.msra.mxu0 0.0
        %703 = vmatpush.msra.mxu0 0.0
        %704 = vmatpush.msra.mxu0 0.0
        %705 = vmatpush.msra.mxu0 0.0
        %706 = vmatpush.msra.mxu0 %v667
        %707 = vmatpush.msra.mxu0 %v666
        %708 = vmatmul.f32.gmra.mxu0 %v669
        %v709 = vpop.f32.mrf.mxu0
        %v710 = vadd.f32 0.0, %v709
        %711 = vmatmul.f32.gmra.mxu0 %v672
        %v712 = vpop.f32.mrf.mxu0
        %v713 = vadd.f32 0.0, %v712
        %714 = vmatmul.f32.gmra.mxu0 %v675
        %v715 = vpop.f32.mrf.mxu0
        %v716 = vadd.f32 0.0, %v715
        %717 = vmatmul.f32.gmra.mxu0 %v678
        %v718 = vpop.f32.mrf.mxu0
        %v719 = vadd.f32 0.0, %v718
        %720 = vmatmul.f32.gmra.mxu0 %v681
        %v721 = vpop.f32.mrf.mxu0
        %v722 = vadd.f32 0.0, %v721
        %723 = vmatmul.f32.gmra.mxu0 %v684
        %v724 = vpop.f32.mrf.mxu0
        %v725 = vadd.f32 0.0, %v724
        %726 = vmatmul.f32.gmra.mxu0 %v687
        %v727 = vpop.f32.mrf.mxu0
        %v728 = vadd.f32 0.0, %v727
        %729 = vmatmul.f32.gmra.mxu0 %v690
        %v730 = vpop.f32.mrf.mxu0
        %v731 = vadd.f32 0.0, %v730
        %732 = vdwg.mxu0
        %v733 = vadd.f32 %v647, %v710
        %v734 = vadd.f32 %v648, %v713
        %v735 = vadd.f32 %v649, %v716
        %v736 = vadd.f32 %v650, %v719
        %v737 = vadd.f32 %v651, %v722
        %v738 = vadd.f32 %v652, %v725
        %v739 = vadd.f32 %v653, %v728
        %v740 = vadd.f32 %v654, %v731
        %v741 = vld [vmem:[%s570 + $0x1] sm:$0xff]
        %v742 = vld [vmem:[%s570 + $0x11] sm:$0xff]
        %v743 = vld [vmem:[%s570 + $0x21] sm:$0xff]
        %v744 = vld [vmem:[%s570 + $0x31] sm:$0xff]
        %v745 = vld [vmem:[%s570 + $0x41] sm:$0xff]
        %v746 = vld [vmem:[%s570 + $0x51] sm:$0xff]
        %v747 = vld [vmem:[%s570 + $0x61] sm:$0xff]
        %v748 = vld [vmem:[%s570 + $0x71] sm:$0xff]
        %s749 = scalar_lea.vmem %s1, 80
        %v750 = vld [vmem:[%s749] sm:$0xff]
        %v751 = vld [vmem:[%s749 + $0x8] sm:$0xff]
        %v753 = vsel %vm354, %v741, 0
        %v756 = vsel %vm354, %v742, 0
        %v759 = vsel %vm354, %v743, 0
        %v762 = vsel %vm354, %v744, 0
        %v765 = vsel %vm354, %v745, 0
        %v768 = vsel %vm354, %v746, 0
        %v771 = vsel %vm354, %v747, 0
        %v774 = vsel %vm354, %v748, 0
        %776 = vmatpush.msra.mxu0 0.0
        %777 = vmatpush.msra.mxu0 0.0
        %778 = vmatpush.msra.mxu0 0.0
        %779 = vmatpush.msra.mxu0 0.0
        %780 = vmatpush.msra.mxu0 0.0
        %781 = vmatpush.msra.mxu0 0.0
        %782 = vmatpush.msra.mxu0 0.0
        %783 = vmatpush.msra.mxu0 0.0
        %784 = vmatpush.msra.mxu0 0.0
        %785 = vmatpush.msra.mxu0 0.0
        %786 = vmatpush.msra.mxu0 0.0
        %787 = vmatpush.msra.mxu0 0.0
        %788 = vmatpush.msra.mxu0 0.0
        %789 = vmatpush.msra.mxu0 0.0
        %790 = vmatpush.msra.mxu0 %v751
        %791 = vmatpush.msra.mxu0 %v750
        %792 = vmatmul.f32.gmra.mxu0 %v753
        %v793 = vpop.f32.mrf.mxu0
        %v794 = vadd.f32 0.0, %v793
        %795 = vmatmul.f32.gmra.mxu0 %v756
        %v796 = vpop.f32.mrf.mxu0
        %v797 = vadd.f32 0.0, %v796
        %798 = vmatmul.f32.gmra.mxu0 %v759
        %v799 = vpop.f32.mrf.mxu0
        %v800 = vadd.f32 0.0, %v799
        %801 = vmatmul.f32.gmra.mxu0 %v762
        %v802 = vpop.f32.mrf.mxu0
        %v803 = vadd.f32 0.0, %v802
        %804 = vmatmul.f32.gmra.mxu0 %v765
        %v805 = vpop.f32.mrf.mxu0
        %v806 = vadd.f32 0.0, %v805
        %807 = vmatmul.f32.gmra.mxu0 %v768
        %v808 = vpop.f32.mrf.mxu0
        %v809 = vadd.f32 0.0, %v808
        %810 = vmatmul.f32.gmra.mxu0 %v771
        %v811 = vpop.f32.mrf.mxu0
        %v812 = vadd.f32 0.0, %v811
        %813 = vmatmul.f32.gmra.mxu0 %v774
        %v814 = vpop.f32.mrf.mxu0
        %v815 = vadd.f32 0.0, %v814
        %816 = vdwg.mxu0
        %v817 = vadd.f32 %v733, %v794
        %v818 = vadd.f32 %v734, %v797
        %v819 = vadd.f32 %v735, %v800
        %v820 = vadd.f32 %v736, %v803
        %v821 = vadd.f32 %v737, %v806
        %v822 = vadd.f32 %v738, %v809
        %v823 = vadd.f32 %v739, %v812
        %v824 = vadd.f32 %v740, %v815
        %s825 = sadd.s32 %s328, 1
        %s826 = smul.u32 %s825, 16
        %s827 = scalar_lea.vmem %s316, %s826
        %v828 = vld [vmem:[%s827] sm:$0xff]
        %v829 = vld [vmem:[%s827 + $0x10] sm:$0xff]
        %v830 = vld [vmem:[%s827 + $0x20] sm:$0xff]
        %v831 = vld [vmem:[%s827 + $0x30] sm:$0xff]
        %v832 = vld [vmem:[%s827 + $0x40] sm:$0xff]
        %v833 = vld [vmem:[%s827 + $0x50] sm:$0xff]
        %v834 = vld [vmem:[%s827 + $0x60] sm:$0xff]
        %v835 = vld [vmem:[%s827 + $0x70] sm:$0xff]
        %s836 = scalar_lea.vmem %s1, 96
        %v837 = vld [vmem:[%s836] sm:$0xff]
        %v838 = vld [vmem:[%s836 + $0x8] sm:$0xff]
        %v840 = vsel %vm354, %v828, 0
        %v843 = vsel %vm354, %v829, 0
        %v846 = vsel %vm354, %v830, 0
        %v849 = vsel %vm354, %v831, 0
        %v852 = vsel %vm354, %v832, 0
        %v855 = vsel %vm354, %v833, 0
        %v858 = vsel %vm354, %v834, 0
        %v861 = vsel %vm354, %v835, 0
        %863 = vmatpush.msra.mxu0 0.0
        %864 = vmatpush.msra.mxu0 0.0
        %865 = vmatpush.msra.mxu0 0.0
        %866 = vmatpush.msra.mxu0 0.0
        %867 = vmatpush.msra.mxu0 0.0
        %868 = vmatpush.msra.mxu0 0.0
        %869 = vmatpush.msra.mxu0 0.0
        %870 = vmatpush.msra.mxu0 0.0
        %871 = vmatpush.msra.mxu0 0.0
        %872 = vmatpush.msra.mxu0 0.0
        %873 = vmatpush.msra.mxu0 0.0
        %874 = vmatpush.msra.mxu0 0.0
        %875 = vmatpush.msra.mxu0 0.0
        %876 = vmatpush.msra.mxu0 0.0
        %877 = vmatpush.msra.mxu0 %v838
        %878 = vmatpush.msra.mxu0 %v837
        %879 = vmatmul.f32.gmra.mxu0 %v840
        %v880 = vpop.f32.mrf.mxu0
        %v881 = vadd.f32 0.0, %v880
        %882 = vmatmul.f32.gmra.mxu0 %v843
        %v883 = vpop.f32.mrf.mxu0
        %v884 = vadd.f32 0.0, %v883
        %885 = vmatmul.f32.gmra.mxu0 %v846
        %v886 = vpop.f32.mrf.mxu0
        %v887 = vadd.f32 0.0, %v886
        %888 = vmatmul.f32.gmra.mxu0 %v849
        %v889 = vpop.f32.mrf.mxu0
        %v890 = vadd.f32 0.0, %v889
        %891 = vmatmul.f32.gmra.mxu0 %v852
        %v892 = vpop.f32.mrf.mxu0
        %v893 = vadd.f32 0.0, %v892
        %894 = vmatmul.f32.gmra.mxu0 %v855
        %v895 = vpop.f32.mrf.mxu0
        %v896 = vadd.f32 0.0, %v895
        %897 = vmatmul.f32.gmra.mxu0 %v858
        %v898 = vpop.f32.mrf.mxu0
        %v899 = vadd.f32 0.0, %v898
        %900 = vmatmul.f32.gmra.mxu0 %v861
        %v901 = vpop.f32.mrf.mxu0
        %v902 = vadd.f32 0.0, %v901
        %903 = vdwg.mxu0
        %v904 = vadd.f32 %v817, %v881
        %v905 = vadd.f32 %v818, %v884
        %v906 = vadd.f32 %v819, %v887
        %v907 = vadd.f32 %v820, %v890
        %v908 = vadd.f32 %v821, %v893
        %v909 = vadd.f32 %v822, %v896
        %v910 = vadd.f32 %v823, %v899
        %v911 = vadd.f32 %v824, %v902
        %s912 = sadd.s32 %s826, 144
        %s913 = scalar_lea.vmem %s316, %s912
        %v914 = vld [vmem:[%s913] sm:$0xff]
        %v915 = vld [vmem:[%s913 + $0x10] sm:$0xff]
        %v916 = vld [vmem:[%s913 + $0x20] sm:$0xff]
        %v917 = vld [vmem:[%s913 + $0x30] sm:$0xff]
        %v918 = vld [vmem:[%s913 + $0x40] sm:$0xff]
        %v919 = vld [vmem:[%s913 + $0x50] sm:$0xff]
        %v920 = vld [vmem:[%s913 + $0x60] sm:$0xff]
        %v921 = vld [vmem:[%s913 + $0x70] sm:$0xff]
        %s922 = scalar_lea.vmem %s1, 112
        %v923 = vld [vmem:[%s922] sm:$0xff]
        %v924 = vld [vmem:[%s922 + $0x8] sm:$0xff]
        %v926 = vsel %vm354, %v914, 0
        %v929 = vsel %vm354, %v915, 0
        %v932 = vsel %vm354, %v916, 0
        %v935 = vsel %vm354, %v917, 0
        %v938 = vsel %vm354, %v918, 0
        %v941 = vsel %vm354, %v919, 0
        %v944 = vsel %vm354, %v920, 0
        %v947 = vsel %vm354, %v921, 0
        %949 = vmatpush.msra.mxu0 0.0
        %950 = vmatpush.msra.mxu0 0.0
        %951 = vmatpush.msra.mxu0 0.0
        %952 = vmatpush.msra.mxu0 0.0
        %953 = vmatpush.msra.mxu0 0.0
        %954 = vmatpush.msra.mxu0 0.0
        %955 = vmatpush.msra.mxu0 0.0
        %956 = vmatpush.msra.mxu0 0.0
        %957 = vmatpush.msra.mxu0 0.0
        %958 = vmatpush.msra.mxu0 0.0
        %959 = vmatpush.msra.mxu0 0.0
        %960 = vmatpush.msra.mxu0 0.0
        %961 = vmatpush.msra.mxu0 0.0
        %962 = vmatpush.msra.mxu0 0.0
        %963 = vmatpush.msra.mxu0 %v924
        %964 = vmatpush.msra.mxu0 %v923
        %965 = vmatmul.f32.gmra.mxu0 %v926
        %v966 = vpop.f32.mrf.mxu0
        %v967 = vadd.f32 0.0, %v966
        %968 = vmatmul.f32.gmra.mxu0 %v929
        %v969 = vpop.f32.mrf.mxu0
        %v970 = vadd.f32 0.0, %v969
        %971 = vmatmul.f32.gmra.mxu0 %v932
        %v972 = vpop.f32.mrf.mxu0
        %v973 = vadd.f32 0.0, %v972
        %974 = vmatmul.f32.gmra.mxu0 %v935
        %v975 = vpop.f32.mrf.mxu0
        %v976 = vadd.f32 0.0, %v975
        %977 = vmatmul.f32.gmra.mxu0 %v938
        %v978 = vpop.f32.mrf.mxu0
        %v979 = vadd.f32 0.0, %v978
        %980 = vmatmul.f32.gmra.mxu0 %v941
        %v981 = vpop.f32.mrf.mxu0
        %v982 = vadd.f32 0.0, %v981
        %983 = vmatmul.f32.gmra.mxu0 %v944
        %v984 = vpop.f32.mrf.mxu0
        %v985 = vadd.f32 0.0, %v984
        %986 = vmatmul.f32.gmra.mxu0 %v947
        %v987 = vpop.f32.mrf.mxu0
        %v988 = vadd.f32 0.0, %v987
        %989 = vdwg.mxu0
        %v990 = vadd.f32 %v904, %v967
        %v991 = vadd.f32 %v905, %v970
        %v992 = vadd.f32 %v906, %v973
        %v993 = vadd.f32 %v907, %v976
        %v994 = vadd.f32 %v908, %v979
        %v995 = vadd.f32 %v909, %v982
        %v996 = vadd.f32 %v910, %v985
        %v997 = vadd.f32 %v911, %v988
        %v998 = vld [vmem:[%s827 + $0x1] sm:$0xff]
        %v999 = vld [vmem:[%s827 + $0x11] sm:$0xff]
        %v1000 = vld [vmem:[%s827 + $0x21] sm:$0xff]
        %v1001 = vld [vmem:[%s827 + $0x31] sm:$0xff]
        %v1002 = vld [vmem:[%s827 + $0x41] sm:$0xff]
        %v1003 = vld [vmem:[%s827 + $0x51] sm:$0xff]
        %v1004 = vld [vmem:[%s827 + $0x61] sm:$0xff]
        %v1005 = vld [vmem:[%s827 + $0x71] sm:$0xff]
        %s1006 = scalar_lea.vmem %s1, 128
        %v1007 = vld [vmem:[%s1006] sm:$0xff]
        %v1008 = vld [vmem:[%s1006 + $0x8] sm:$0xff]
        %v1010 = vsel %vm354, %v998, 0
        %v1013 = vsel %vm354, %v999, 0
        %v1016 = vsel %vm354, %v1000, 0
        %v1019 = vsel %vm354, %v1001, 0
        %v1022 = vsel %vm354, %v1002, 0
        %v1025 = vsel %vm354, %v1003, 0
        %v1028 = vsel %vm354, %v1004, 0
        %v1031 = vsel %vm354, %v1005, 0
        %1033 = vmatpush.msra.mxu0 0.0
        %1034 = vmatpush.msra.mxu0 0.0
        %1035 = vmatpush.msra.mxu0 0.0
        %1036 = vmatpush.msra.mxu0 0.0
        %1037 = vmatpush.msra.mxu0 0.0
        %1038 = vmatpush.msra.mxu0 0.0
        %1039 = vmatpush.msra.mxu0 0.0
        %1040 = vmatpush.msra.mxu0 0.0
        %1041 = vmatpush.msra.mxu0 0.0
        %1042 = vmatpush.msra.mxu0 0.0
        %1043 = vmatpush.msra.mxu0 0.0
        %1044 = vmatpush.msra.mxu0 0.0
        %1045 = vmatpush.msra.mxu0 0.0
        %1046 = vmatpush.msra.mxu0 0.0
        %1047 = vmatpush.msra.mxu0 %v1008
        %1048 = vmatpush.msra.mxu0 %v1007
        %1049 = vmatmul.f32.gmra.mxu0 %v1010
        %v1050 = vpop.f32.mrf.mxu0
        %v1051 = vadd.f32 0.0, %v1050
        %1052 = vmatmul.f32.gmra.mxu0 %v1013
        %v1053 = vpop.f32.mrf.mxu0
        %v1054 = vadd.f32 0.0, %v1053
        %1055 = vmatmul.f32.gmra.mxu0 %v1016
        %v1056 = vpop.f32.mrf.mxu0
        %v1057 = vadd.f32 0.0, %v1056
        %1058 = vmatmul.f32.gmra.mxu0 %v1019
        %v1059 = vpop.f32.mrf.mxu0
        %v1060 = vadd.f32 0.0, %v1059
        %1061 = vmatmul.f32.gmra.mxu0 %v1022
        %v1062 = vpop.f32.mrf.mxu0
        %v1063 = vadd.f32 0.0, %v1062
        %1064 = vmatmul.f32.gmra.mxu0 %v1025
        %v1065 = vpop.f32.mrf.mxu0
        %v1066 = vadd.f32 0.0, %v1065
        %1067 = vmatmul.f32.gmra.mxu0 %v1028
        %v1068 = vpop.f32.mrf.mxu0
        %v1069 = vadd.f32 0.0, %v1068
        %1070 = vmatmul.f32.gmra.mxu0 %v1031
        %v1071 = vpop.f32.mrf.mxu0
        %v1072 = vadd.f32 0.0, %v1071
        %1073 = vdwg.mxu0
        %v1074 = vadd.f32 %v990, %v1051
        %v1075 = vadd.f32 %v991, %v1054
        %v1076 = vadd.f32 %v992, %v1057
        %v1077 = vadd.f32 %v993, %v1060
        %v1078 = vadd.f32 %v994, %v1063
        %v1079 = vadd.f32 %v995, %v1066
        %v1080 = vadd.f32 %v996, %v1069
        %v1081 = vadd.f32 %v997, %v1072
        %v1082 = vld [vmem:[%s2] sm:$0x1]
        %v1084 = vperm.slane %v1082, 0
        %v1086 = vadd.f32 %v1074, %v1084
        %v1087 = vadd.f32 %v1075, %v1084
        %v1088 = vadd.f32 %v1076, %v1084
        %v1089 = vadd.f32 %v1077, %v1084
        %v1090 = vadd.f32 %v1078, %v1084
        %v1091 = vadd.f32 %v1079, %v1084
        %v1092 = vadd.f32 %v1080, %v1084
        %v1093 = vadd.f32 %v1081, %v1084
        %v1094 = vmax.f32 %v1086, 0.0
        %v1095 = vmax.f32 %v1087, 0.0
        %v1096 = vmax.f32 %v1088, 0.0
        %v1097 = vmax.f32 %v1089, 0.0
        %v1098 = vmax.f32 %v1090, 0.0
        %v1099 = vmax.f32 %v1091, 0.0
        %v1100 = vmax.f32 %v1092, 0.0
        %v1101 = vmax.f32 %v1093, 0.0
        %v1102 = vld [vmem:[%s3] sm:$0xff]
        %v1103 = vld [vmem:[%s3 + $0x8] sm:$0xff]
        %v1104 = vld [vmem:[%s325] sm:$0xff]
        %v1105 = vld [vmem:[%s325 + $0x8] sm:$0xff]
        %v1106 = vld [vmem:[%s325 + $0x10] sm:$0xff]
        %v1107 = vld [vmem:[%s325 + $0x18] sm:$0xff]
        %v1108 = vld [vmem:[%s325 + $0x20] sm:$0xff]
        %v1109 = vld [vmem:[%s325 + $0x28] sm:$0xff]
        %v1110 = vld [vmem:[%s325 + $0x30] sm:$0xff]
        %v1111 = vld [vmem:[%s325 + $0x38] sm:$0xff]
        %v1112 = vld [vmem:[%s5] sm:$0xff]
        %v1113 = vld [vmem:[%s5 + $0x8] sm:$0xff]
        %v1114 = vld [vmem:[%s5 + $0x10] sm:$0xff]
        %v1115 = vld [vmem:[%s5 + $0x18] sm:$0xff]
        %vm1116 = vcmask 261120
        %v1118 = vsel %vm1116, %v1104, 0
        %v1121 = vsel %vm1116, %v1105, 0
        %v1124 = vsel %vm1116, %v1106, 0
        %v1127 = vsel %vm1116, %v1107, 0
        %v1130 = vsel %vm1116, %v1108, 0
        %v1133 = vsel %vm1116, %v1109, 0
        %v1136 = vsel %vm1116, %v1110, 0
        %v1139 = vsel %vm1116, %v1111, 0
        %1141 = vmatpush.msra.mxu0 0.0
        %1142 = vmatpush.msra.mxu0 0.0
        %1143 = vmatpush.msra.mxu0 0.0
        %1144 = vmatpush.msra.mxu0 0.0
        %1145 = vmatpush.msra.mxu0 0.0
        %1146 = vmatpush.msra.mxu0 0.0
        %1147 = vmatpush.msra.mxu0 0.0
        %1148 = vmatpush.msra.mxu0 0.0
        %1149 = vmatpush.msra.mxu0 0.0
        %1150 = vmatpush.msra.mxu0 0.0
        %1151 = vmatpush.msra.mxu0 0.0
        %1152 = vmatpush.msra.mxu0 0.0
        %1153 = vmatpush.msra.mxu0 %v1115
        %1154 = vmatpush.msra.mxu0 %v1114
        %1155 = vmatpush.msra.mxu0 %v1113
        %1156 = vmatpush.msra.mxu0 %v1112
        %1157 = vmatmul.f32.gmra.mxu0 %v1118
        %v1158 = vpop.f32.mrf.mxu0
        %v1159 = vadd.f32 0.0, %v1158
        %1160 = vmatmul.f32.gmra.mxu0 %v1121
        %v1161 = vpop.f32.mrf.mxu0
        %v1162 = vadd.f32 0.0, %v1161
        %1163 = vmatmul.f32.gmra.mxu0 %v1124
        %v1164 = vpop.f32.mrf.mxu0
        %v1165 = vadd.f32 0.0, %v1164
        %1166 = vmatmul.f32.gmra.mxu0 %v1127
        %v1167 = vpop.f32.mrf.mxu0
        %v1168 = vadd.f32 0.0, %v1167
        %1169 = vmatmul.f32.gmra.mxu0 %v1130
        %v1170 = vpop.f32.mrf.mxu0
        %v1171 = vadd.f32 0.0, %v1170
        %1172 = vmatmul.f32.gmra.mxu0 %v1133
        %v1173 = vpop.f32.mrf.mxu0
        %v1174 = vadd.f32 0.0, %v1173
        %1175 = vmatmul.f32.gmra.mxu0 %v1136
        %v1176 = vpop.f32.mrf.mxu0
        %v1177 = vadd.f32 0.0, %v1176
        %1178 = vmatmul.f32.gmra.mxu0 %v1139
        %v1179 = vpop.f32.mrf.mxu0
        %v1180 = vadd.f32 0.0, %v1179
        %1181 = vdwg.mxu0
        %v1183 = vsel %vm354, %v1094, 0
        %v1186 = vsel %vm354, %v1095, 0
        %v1189 = vsel %vm354, %v1096, 0
        %v1192 = vsel %vm354, %v1097, 0
        %v1195 = vsel %vm354, %v1098, 0
        %v1198 = vsel %vm354, %v1099, 0
        %v1201 = vsel %vm354, %v1100, 0
        %v1204 = vsel %vm354, %v1101, 0
        %1206 = vmatpush.msra.mxu0 0.0
        %1207 = vmatpush.msra.mxu0 0.0
        %1208 = vmatpush.msra.mxu0 0.0
        %1209 = vmatpush.msra.mxu0 0.0
        %1210 = vmatpush.msra.mxu0 0.0
        %1211 = vmatpush.msra.mxu0 0.0
        %1212 = vmatpush.msra.mxu0 0.0
        %1213 = vmatpush.msra.mxu0 0.0
        %1214 = vmatpush.msra.mxu0 0.0
        %1215 = vmatpush.msra.mxu0 0.0
        %1216 = vmatpush.msra.mxu0 0.0
        %1217 = vmatpush.msra.mxu0 0.0
        %1218 = vmatpush.msra.mxu0 0.0
        %1219 = vmatpush.msra.mxu0 0.0
        %1220 = vmatpush.msra.mxu0 %v1103
        %1221 = vmatpush.msra.mxu0 %v1102
        %1222 = vmatmul.f32.gmra.mxu0 %v1183
        %v1223 = vpop.f32.mrf.mxu0
        %v1224 = vadd.f32 %v1159, %v1223
        %1225 = vmatmul.f32.gmra.mxu0 %v1186
        %v1226 = vpop.f32.mrf.mxu0
        %v1227 = vadd.f32 %v1162, %v1226
        %1228 = vmatmul.f32.gmra.mxu0 %v1189
        %v1229 = vpop.f32.mrf.mxu0
        %v1230 = vadd.f32 %v1165, %v1229
        %1231 = vmatmul.f32.gmra.mxu0 %v1192
        %v1232 = vpop.f32.mrf.mxu0
        %v1233 = vadd.f32 %v1168, %v1232
        %1234 = vmatmul.f32.gmra.mxu0 %v1195
        %v1235 = vpop.f32.mrf.mxu0
        %v1236 = vadd.f32 %v1171, %v1235
        %1237 = vmatmul.f32.gmra.mxu0 %v1198
        %v1238 = vpop.f32.mrf.mxu0
        %v1239 = vadd.f32 %v1174, %v1238
        %1240 = vmatmul.f32.gmra.mxu0 %v1201
        %v1241 = vpop.f32.mrf.mxu0
        %v1242 = vadd.f32 %v1177, %v1241
        %1243 = vmatmul.f32.gmra.mxu0 %v1204
        %v1244 = vpop.f32.mrf.mxu0
        %v1245 = vadd.f32 %v1180, %v1244
        %1246 = vdwg.mxu0
        %v1247 = vld [vmem:[%s6] sm:$0x1]
        %v1249 = vperm.slane %v1247, 0
        %v1251 = vadd.f32 %v1224, %v1249
        %v1252 = vadd.f32 %v1227, %v1249
        %v1253 = vadd.f32 %v1230, %v1249
        %v1254 = vadd.f32 %v1233, %v1249
        %v1255 = vadd.f32 %v1236, %v1249
        %v1256 = vadd.f32 %v1239, %v1249
        %v1257 = vadd.f32 %v1242, %v1249
        %v1258 = vadd.f32 %v1245, %v1249
        %vm1259 = vcmask 523264
        %1260 = vst.msk [vmem:[%s311] sm:$0xff] %vm1259, %v1251
        %1261 = vst.msk [vmem:[%s311 + $0x8] sm:$0xff] %vm1259, %v1252
        %1262 = vst.msk [vmem:[%s311 + $0x10] sm:$0xff] %vm1259, %v1253
        %1263 = vst.msk [vmem:[%s311 + $0x18] sm:$0xff] %vm1259, %v1254
        %1264 = vst.msk [vmem:[%s311 + $0x20] sm:$0xff] %vm1259, %v1255
        %1265 = vst.msk [vmem:[%s311 + $0x28] sm:$0xff] %vm1259, %v1256
        %1266 = vst.msk [vmem:[%s311 + $0x30] sm:$0xff] %vm1259, %v1257
        %1267 = vst.msk [vmem:[%s311 + $0x38] sm:$0xff] %vm1259, %v1258
        %s1268 = sand.u32 %s202, 1
        %s1269 = scalar_lea.sflag [#allocation3], %s1268
        %s1270 = sand.u32 %s202, 1
        %s1271 = smul.addr %s1270, 64
        %s1272 = scalar_lea.vmem [#allocation2], %s1271
        // Predicated region
        $region49: #{bottleneck_forward.3} parent=47 // pred_check
          %p1273 = pneg %p212
        $region50: #{bottleneck_forward.3} parent=47 // pred_check_branch
          %1275 = sbr.rel (%p1273) target = $region52
        $region51: #{bottleneck_forward.3} parent=47 // pred_region
          %s1276 = smul.u32 8, %s26
          %1278 = vsyncadd %s1269, 0
          %s1279 = smul.addr %s25, 8
          %s1280 = sadd.s32 %s1276, %s1279
          %s1281 = smul.addr %s1280, 8
          %s1282 = scalar_lea.hbm %s7, %s1281
          %s1283 = sshll.u32 %s1272, 4
          %s1284 = int_to_ptr.vmem [resolvable:$true] %s1283
          %s1285 = sshll.u32 %s1282, 4
          %s1286 = int_to_ptr.hbm [resolvable:$true] %s1285
          %1291 = dma.vmem_to_hbm [thread:$0]  %s1284, 1024, %s1286, %s1269, 128, 128, 8
        $region52: #{bottleneck_forward.3} parent=47 // pred_fallthru
          _
      $region48: #{bottleneck_forward.3} parent=5 // pred_fallthru
        _
      %p1292 = scmp.le.s32.totalorder 2, %s16
      // Predicated region
      $region53: #{bottleneck_forward.3} parent=5 // pred_check
        %p1293 = pneg %p1292
      $region54: #{bottleneck_forward.3} parent=5 // pred_check_branch
        %1295 = sbr.rel (%p1293) target = $region56
      $region55: #{bottleneck_forward.3} parent=5 // pred_region
        %s1296 = ssub.s32 %s16, 2
        // Predicated region
        $region57: #{bottleneck_forward.3} parent=55 // pred_check
          %p1297 = pneg %p218
        $region58: #{bottleneck_forward.3} parent=55 // pred_check_branch
          %1299 = sbr.rel (%p1297) target = $region60
        $region59: #{bottleneck_forward.3} parent=55 // pred_region
          %s1300 = sand.u32 %s203, 1
          %s1301 = scalar_lea.sflag [#allocation3], %s1300
          %s1302 = sand.u32 %s203, 1
          %s1303 = smul.addr %s1302, 64
          %s1304 = scalar_lea.vmem [#allocation2], %s1303
          %1306 = dma.done %s1301, 1024
        $region60: #{bottleneck_forward.3} parent=55 // pred_fallthru
          _
      $region56: #{bottleneck_forward.3} parent=5 // pred_fallthru
        _
    $region6: #{bottleneck_forward.3} parent=1 // loop_footer
      %s20 = sadd.s32 1, %s16
    $region7: #{bottleneck_forward.3} parent=1 // loop_footer_branch
      %15 = sbr.rel target = $region3
    $region8: #{bottleneck_forward.3} parent=1 // loop_exit
      _
    %1307 = vsyncpa [#allocation3], 1
    %s1308 = scalar_lea.sflag [#allocation3], 1
    %1309 = vsyncpa %s1308, 1

</llo_original>
